<compile_context>
chip_gen: v7x
topology: tpu7x:2x2x1
jax: 0.10.0
libtpu: 0.0.40
codegen_flags: <defaults>
</compile_context>

<pallas_src>
import functools

import jax
import jax.numpy as jnp
from jax.experimental import pallas as pl
from jax.experimental.pallas import tpu as pltpu


HEAD_LANES = 128  # fused + lane-padded classifier head width (nclass + ncluster <= 128)


def _round_up(x, m):
    return (x + m - 1) // m * m


def _vmem_capacity_bytes():
    try:
        return int(pltpu.get_tpu_info().vmem_capacity_bytes)
    except Exception:
        return 64 * 1024 * 1024  # conservative fallback (v7x-sized)


@functools.lru_cache(maxsize=None)
def _buffered_supported():
    """Probe whether pipeline_mode=pl.Buffered(3) lowers on this install."""
    try:
        def _k(x_ref, o_ref):
            o_ref[...] = x_ref[...]

        spec3 = pl.BlockSpec((8, 128), lambda i: (i, 0),
                             pipeline_mode=pl.Buffered(3))
        out = pl.pallas_call(
            _k,
            out_shape=jax.ShapeDtypeStruct((16, 128), jnp.float32),
            grid=(2,),
            in_specs=[spec3],
            out_specs=pl.BlockSpec((8, 128), lambda i: (i, 0)),
        )(jnp.zeros((16, 128), jnp.float32))
        jax.block_until_ready(out)
        return True
    except Exception:
        return False


def _ahat_spec(shape, index_map, buffers):
    if buffers > 2 and _buffered_supported():
        return pl.BlockSpec(shape, index_map, pipeline_mode=pl.Buffered(buffers))
    return pl.BlockSpec(shape, index_map)


# ---------------------------------------------------------------------------
# Kernel A (small graphs): fully fused forward, whole graph resident in VMEM.
# Ahat is loaded from HBM exactly once; h1/h2 never round-trip.
# ---------------------------------------------------------------------------
def cpgcn_fused_kernel(ahat_ref, x_ref, w1_ref, b1_ref, w2_ref, b2_ref,
                       wf_ref, bf_ref, heads_ref):
    a = ahat_ref[...]
    xw1 = jnp.dot(x_ref[...], w1_ref[...], preferred_element_type=jnp.float32)
    h1 = jnp.maximum(
        jnp.dot(a, xw1.astype(jnp.bfloat16), preferred_element_type=jnp.float32)
        + b1_ref[...], 0.0).astype(jnp.bfloat16)
    # dropout(training=False) == identity
    hw2 = jnp.dot(h1, w2_ref[...], preferred_element_type=jnp.float32)
    h2 = (jnp.dot(a, hw2.astype(jnp.bfloat16), preferred_element_type=jnp.float32)
          + b2_ref[...]).astype(jnp.bfloat16)
    heads_ref[...] = (jnp.dot(h2, wf_ref[...],
                              preferred_element_type=jnp.float32) + bf_ref[...])


# ---------------------------------------------------------------------------
# Kernel B: plain row-tiled dense matmul, out = x @ w (computed ONCE; not
# recomputed per Ahat row tile).  Used for XW1 = x @ W1 and HW2 = h1 @ W2.
# ---------------------------------------------------------------------------
def matmul_kernel(x_ref, w_ref, o_ref):
    o_ref[...] = jnp.dot(x_ref[...], w_ref[...],
                         preferred_element_type=jnp.float32).astype(o_ref.dtype)


# ---------------------------------------------------------------------------
# Kernel C: h1 = relu(Ahat @ XW1 + b1), grid = (row tiles, K tiles over Ahat
# columns), f32 accumulator scratch, lane-dense (128-wide) output.
# ---------------------------------------------------------------------------
def prop_relu_kernel(ahat_ref, xw_ref, b_ref, h1_ref, acc_ref):
    @pl.when(pl.program_id(1) == 0)
    def _():
        acc_ref[...] = jnp.zeros_like(acc_ref)

    acc_ref[...] += jnp.dot(ahat_ref[...], xw_ref[...],
                            preferred_element_type=jnp.float32)

    @pl.when(pl.program_id(1) == pl.num_programs(1) - 1)
    def _():
        h1_ref[...] = jnp.maximum(acc_ref[...] + b_ref[...], 0.0).astype(h1_ref.dtype)


# ---------------------------------------------------------------------------
# Kernel D: h2 = Ahat @ HW2 + b2 ; heads = h2 @ [Wf1|Wf2|0] + [bf1|bf2|0]
# Same (rows, K) grid; the fused head matmul runs only on the last K step.
# ---------------------------------------------------------------------------
def prop_heads_kernel(ahat_ref, hw_ref, b2_ref, wf_ref, bf_ref, heads_ref, acc_ref):
    @pl.when(pl.program_id(1) == 0)
    def _():
        acc_ref[...] = jnp.zeros_like(acc_ref)

    acc_ref[...] += jnp.dot(ahat_ref[...], hw_ref[...],
                            preferred_element_type=jnp.float32)

    @pl.when(pl.program_id(1) == pl.num_programs(1) - 1)
    def _():
        h2 = (acc_ref[...] + b2_ref[...]).astype(jnp.bfloat16)
        heads_ref[...] = (jnp.dot(h2, wf_ref[...],
                                  preferred_element_type=jnp.float32) + bf_ref[...])


# ---------------------------------------------------------------------------
# Graph preprocessing (once per graph, NOT per forward): dense
# Ahat = D^{-1/2} (A + I_remaining) D^{-1/2}, matching PyG gcn_norm with
# add_remaining_self_loops (duplicate edges -- incl. duplicate self-loops --
# are scatter-added; nodes without an explicit self-loop get a weight-1 loop).
# Sparse scatter has no clean dense-tile Pallas form at this size -> plain JAX.
# ---------------------------------------------------------------------------
def build_normalized_adj(edge_index, edge_weight, num_nodes, dtype=jnp.bfloat16):
    src = edge_index[0]
    dst = edge_index[1]
    w = edge_weight.astype(jnp.float32)

    a = jnp.zeros((num_nodes, num_nodes), jnp.float32).at[dst, src].add(w)

    loop_count = jnp.zeros((num_nodes,), jnp.float32).at[src].add(
        jnp.where(src == dst, 1.0, 0.0))
    a = a + jnp.diag(jnp.where(loop_count > 0, 0.0, 1.0))

    deg = a.sum(axis=1)
    dinv = jnp.where(deg > 0, jax.lax.rsqrt(deg), 0.0)
    return (dinv[:, None] * a * dinv[None, :]).astype(dtype)


# ---------------------------------------------------------------------------
# Forward wrapper.
# ---------------------------------------------------------------------------
def cpgcn_forward(ahat, x, params, *, force_tiled=False, tile_m=None):
    """ahat: dense normalized adjacency (precompute with build_normalized_adj)."""
    n, nfeat = x.shape
    nhid = params["w1"].shape[1]
    nclass = params["wf1"].shape[1]
    ncluster = params["wf2"].shape[1]
    nheads = nclass + ncluster
    assert nheads <= HEAD_LANES, "fused head width must fit one 128-lane tile"

    nhid_pad = max(HEAD_LANES, _round_up(nhid, 128))   # lane-dense intermediates

    vmem_cap = _vmem_capacity_bytes()
    vmem_budget = max(16 << 20, vmem_cap - (8 << 20))   # leave ~8 MiB headroom

    # --- bf16 operands for the MXU; biases stay f32 ---------------------------
    w1 = jnp.zeros((nfeat, nhid_pad), jnp.bfloat16).at[:, :nhid].set(
        params["w1"].astype(jnp.bfloat16))
    w2 = jnp.zeros((nhid_pad, nhid_pad), jnp.bfloat16).at[:nhid, :nhid].set(
        params["w2"].astype(jnp.bfloat16))
    b1 = jnp.zeros((1, nhid_pad), jnp.float32).at[:, :nhid].set(
        params["b1"].astype(jnp.float32).reshape(1, -1))
    b2 = jnp.zeros((1, nhid_pad), jnp.float32).at[:, :nhid].set(
        params["b2"].astype(jnp.float32).reshape(1, -1))

    # fused + lane-padded classifier heads -> one matmul, unmasked 128-lane stores
    wf = jnp.zeros((nhid_pad, HEAD_LANES), jnp.bfloat16)
    wf = wf.at[:nhid, :nclass].set(params["wf1"].astype(jnp.bfloat16))
    wf = wf.at[:nhid, nclass:nheads].set(params["wf2"].astype(jnp.bfloat16))
    bf = jnp.zeros((1, HEAD_LANES), jnp.float32)
    bf = bf.at[:, :nclass].set(params["bf1"].astype(jnp.float32).reshape(1, -1))
    bf = bf.at[:, nclass:nheads].set(params["bf2"].astype(jnp.float32).reshape(1, -1))

    # --- path selection --------------------------------------------------------
    n128 = max(HEAD_LANES, _round_up(n, 128))
    fused_bytes = (n128 * n128 * 2                      # Ahat (bf16)
                   + n128 * nfeat * 2                   # x (bf16)
                   + n128 * HEAD_LANES * 4              # heads out (f32)
                   + 4 * n128 * nhid_pad * 4            # f32 intermediates
                   + (nfeat + 2 * nhid_pad + HEAD_LANES) * nhid_pad * 2)
    use_fused = (not force_tiled) and fused_bytes <= int(0.4 * vmem_budget)

    if use_fused:
        # Single pallas_call: Ahat streamed from HBM once, no h1 round-trip.
        n_pad = n128
        ahat_p = jnp.zeros((n_pad, n_pad), jnp.bfloat16).at[:n, :n].set(
            ahat.astype(jnp.bfloat16))
        x_p = jnp.zeros((n_pad, nfeat), jnp.bfloat16).at[:n, :].set(
            x.astype(jnp.bfloat16))
        vmem_limit = int(min(vmem_budget, max(32 << 20, 2 * fused_bytes)))
        heads = pl.pallas_call(
            cpgcn_fused_kernel,
            out_shape=jax.ShapeDtypeStruct((n_pad, HEAD_LANES), jnp.float32),
            compiler_params=pltpu.CompilerParams(vmem_limit_bytes=vmem_limit),
        )(ahat_p, x_p, w1, b1, w2, b2, wf, bf)
        return heads[:n, :nclass], heads[:n, nclass:nheads]

    # --- tiled path (larger graphs) --------------------------------------------
    auto_tile = tile_m is None
    if auto_tile:
        # 512-row tiles on 128-MiB parts (v5e/v6e), 256 on 64-MiB v7x.
        tile_m = 512 if vmem_cap >= (100 << 20) else 256
    tile_m = max(128, _round_up(tile_m, 128))
    n_pad = _round_up(n, tile_m)
    if auto_tile:
        # keep enough row tiles for megacore sharding on multi-TC parts
        while n_pad // tile_m < 4 and tile_m > 128:
            tile_m //= 2
            n_pad = _round_up(n, tile_m)
    tile_k = tile_m                      # Ahat column tile (K axis of propagation)
    grid_rows = n_pad // tile_m
    grid_k = n_pad // tile_k
    ahat_buffers = 3 if vmem_cap >= (100 << 20) else 2   # deeper pipeline off v7x

    ahat_p = jnp.zeros((n_pad, n_pad), jnp.bfloat16).at[:n, :n].set(
        ahat.astype(jnp.bfloat16))
    x_p = jnp.zeros((n_pad, nfeat), jnp.bfloat16).at[:n, :].set(
        x.astype(jnp.bfloat16))

    # scoped-VMEM limit from the per-step working set, clamped to chip capacity
    step_bytes = (ahat_buffers * tile_m * tile_k * 2      # Ahat stream
                  + 2 * tile_k * nhid_pad * 2             # XW1 / HW2 K blocks
                  + 2 * tile_m * nhid_pad * 4             # output double buffer
                  + tile_m * nhid_pad * 4                 # f32 accumulator
                  + nhid_pad * (nhid_pad + HEAD_LANES) * 2  # resident weights
                  + 2 * tile_m * nfeat * 2 + nfeat * nhid_pad * 2)
    vmem_limit = int(min(vmem_budget, max(32 << 20, 4 * step_bytes)))

    cparams_rows = pltpu.CompilerParams(
        dimension_semantics=("parallel",), vmem_limit_bytes=vmem_limit)
    cparams_2d = pltpu.CompilerParams(
        dimension_semantics=("parallel", "arbitrary"), vmem_limit_bytes=vmem_limit)

    row_out = lambda cols: pl.BlockSpec((tile_m, cols), lambda i, k: (i, 0))
    full_2d = lambda shape: pl.BlockSpec(shape, lambda i, k: (0, 0))

    # --- XW1 = x @ W1 (computed once; row-tiled) --------------------------------
    xw1 = pl.pallas_call(
        matmul_kernel,
        out_shape=jax.ShapeDtypeStruct((n_pad, nhid_pad), jnp.bfloat16),
        grid=(grid_rows,),
        in_specs=[pl.BlockSpec((tile_m, nfeat), lambda i: (i, 0)),
                  pl.BlockSpec((nfeat, nhid_pad), lambda i: (0, 0))],
        out_specs=pl.BlockSpec((tile_m, nhid_pad), lambda i: (i, 0)),
        compiler_params=cparams_rows,
    )(x_p, w1)

    # --- h1 = relu(Ahat @ XW1 + b1), (rows, K) grid ------------------------------
    h1 = pl.pallas_call(
        prop_relu_kernel,
        out_shape=jax.ShapeDtypeStruct((n_pad, nhid_pad), jnp.bfloat16),
        grid=(grid_rows, grid_k),
        in_specs=[
            _ahat_spec((tile_m, tile_k), lambda i, k: (i, k), ahat_buffers),
            pl.BlockSpec((tile_k, nhid_pad), lambda i, k: (k, 0)),
            full_2d((1, nhid_pad)),
        ],
        out_specs=row_out(nhid_pad),
        scratch_shapes=[pltpu.VMEM((tile_m, nhid_pad), jnp.float32)],
        compiler_params=cparams_2d,
    )(ahat_p, xw1, b1)

    # --- HW2 = h1 @ W2 (computed once; row-tiled) --------------------------------
    hw2 = pl.pallas_call(
        matmul_kernel,
        out_shape=jax.ShapeDtypeStruct((n_pad, nhid_pad), jnp.bfloat16),
        grid=(grid_rows,),
        in_specs=[pl.BlockSpec((tile_m, nhid_pad), lambda i: (i, 0)),
                  pl.BlockSpec((nhid_pad, nhid_pad), lambda i: (0, 0))],
        out_specs=pl.BlockSpec((tile_m, nhid_pad), lambda i: (i, 0)),
        compiler_params=cparams_rows,
    )(h1, w2)

    # --- h2 = Ahat @ HW2 + b2; fused heads; (rows, K) grid -----------------------
    heads = pl.pallas_call(
        prop_heads_kernel,
        out_shape=jax.ShapeDtypeStruct((n_pad, HEAD_LANES), jnp.float32),
        grid=(grid_rows, grid_k),
        in_specs=[
            _ahat_spec((tile_m, tile_k), lambda i, k: (i, k), ahat_buffers),
            pl.BlockSpec((tile_k, nhid_pad), lambda i, k: (k, 0)),
            full_2d((1, nhid_pad)),
            full_2d((nhid_pad, HEAD_LANES)),
            full_2d((1, HEAD_LANES)),
        ],
        out_specs=row_out(HEAD_LANES),
        scratch_shapes=[pltpu.VMEM((tile_m, nhid_pad), jnp.float32)],
        compiler_params=cparams_2d,
    )(ahat_p, hw2, b2, wf, bf)

    return heads[:n, :nclass], heads[:n, nclass:nheads]


# ---------------------------------------------------------------------------
# Pure-JAX reference (mirrors the kernel's bf16-operand / f32-accumulate math).
# ---------------------------------------------------------------------------
def reference_forward(ahat, x, params):
    bf16 = jnp.bfloat16
    a = ahat.astype(bf16)
    xw1 = jnp.dot(x.astype(bf16), params["w1"].astype(bf16),
                  preferred_element_type=jnp.float32)
    h1 = jnp.maximum(jnp.dot(a, xw1.astype(bf16),
                             preferred_element_type=jnp.float32)
                     + params["b1"].reshape(1, -1), 0.0).astype(bf16)
    hw2 = jnp.dot(h1, params["w2"].astype(bf16),
                  preferred_element_type=jnp.float32)
    h2 = (jnp.dot(a, hw2.astype(bf16), preferred_element_type=jnp.float32)
          + params["b2"].reshape(1, -1)).astype(bf16)
    pred = jnp.dot(h2, params["wf1"].astype(bf16),
                   preferred_element_type=jnp.float32) + params["bf1"].reshape(1, -1)
    clus = jnp.dot(h2, params["wf2"].astype(bf16),
                   preferred_element_type=jnp.float32) + params["bf2"].reshape(1, -1)
    return pred, clus


def init_params(key, nfeat, nhid, nclass, ncluster):
    ks = jax.random.split(key, 6)
    scale = lambda fan_in: 1.0 / jnp.sqrt(jnp.float32(fan_in))
    return {
        "w1": jax.random.normal(ks[0], (nfeat, nhid), jnp.float32) * scale(nfeat),
        "b1": jnp.zeros((1, nhid), jnp.float32),
        "w2": jax.random.normal(ks[1], (nhid, nhid), jnp.float32) * scale(nhid),
        "b2": jnp.zeros((1, nhid), jnp.float32),
        "wf1": jax.random.normal(ks[2], (nhid, nclass), jnp.float32) * scale(nhid),
        "bf1": jax.random.uniform(ks[3], (1, nclass), jnp.float32,
                                  -1.0, 1.0) * scale(nhid),
        "wf2": jax.random.normal(ks[4], (nhid, ncluster), jnp.float32) * scale(nhid),
        "bf2": jax.random.uniform(ks[5], (1, ncluster), jnp.float32,
                                  -1.0, 1.0) * scale(nhid),
    }


if __name__ == "__main__":
    key = jax.random.PRNGKey(0)
    k_feat, k_edge, k_w, k_param = jax.random.split(key, 4)

    N = 200        # nodes
    NFEAT = 48
    NHID = 32
    NCLASS = 4
    NCLUSTER = 3
    E = 800        # directed edges

    x = jax.random.normal(k_feat, (N, NFEAT), jnp.float32)
    edge_index = jax.random.randint(k_edge, (2, E), 0, N, dtype=jnp.int32)
    edge_weight = jax.random.uniform(k_w, (E,), jnp.float32, 0.5, 1.5)
    params = init_params(k_param, NFEAT, NHID, NCLASS, NCLUSTER)

    # Ahat built once per graph (hoisted out of the per-forward path), in bf16.
    ahat = build_normalized_adj(edge_index, edge_weight, N)
    ref_pred, ref_clus = reference_forward(ahat, x, params)

    # Path 1: fused single-call kernel (auto-selected; whole graph in VMEM).
    pred_f, clus_f = cpgcn_forward(ahat, x, params)
    # Path 2: tiled path (hoisted XW1/HW2 + K-tiled propagation; 2x2 grid here).
    pred_t, clus_t = cpgcn_forward(ahat, x, params, force_tiled=True, tile_m=128)
    jax.block_until_ready((pred_f, clus_f, pred_t, clus_t))

    assert pred_f.shape == (N, NCLASS) and clus_f.shape == (N, NCLUSTER)
    assert pred_t.shape == (N, NCLASS) and clus_t.shape == (N, NCLUSTER)

    assert jnp.allclose(pred_f, ref_pred, rtol=2e-2, atol=2e-2)
    assert jnp.allclose(clus_f, ref_clus, rtol=2e-2, atol=2e-2)
    assert jnp.allclose(pred_t, ref_pred, rtol=2e-2, atol=2e-2)
    assert jnp.allclose(clus_t, ref_clus, rtol=2e-2, atol=2e-2)

    print("KERNEL_OK")
</pallas_src>

<mosaic_0001>
module attributes {stable_mosaic.version = 11 : i64} {
  func.func @cpgcn_fused_kernel(%arg0: memref<256x256xbf16, #tpu.memory_space<vmem>>, %arg1: memref<256x48xbf16, #tpu.memory_space<vmem>>, %arg2: memref<48x128xbf16, #tpu.memory_space<vmem>>, %arg3: memref<1x128xf32, #tpu.memory_space<vmem>>, %arg4: memref<128x128xbf16, #tpu.memory_space<vmem>>, %arg5: memref<1x128xf32, #tpu.memory_space<vmem>>, %arg6: memref<128x128xbf16, #tpu.memory_space<vmem>>, %arg7: memref<1x128xf32, #tpu.memory_space<vmem>>, %arg8: memref<256x128xf32, #tpu.memory_space<vmem>>) attributes {dimension_semantics = [], scalar_prefetch = 0 : i64, scratch_operands = 0 : i64, tpu.core_type = #tpu.core_type<tc>} {
    %c0 = arith.constant 0 : index
    %c0_0 = arith.constant 0 : index
    %0 = vector.load %arg0[%c0, %c0_0] : memref<256x256xbf16, #tpu.memory_space<vmem>>, vector<256x256xbf16>
    %c0_1 = arith.constant 0 : index
    %c0_2 = arith.constant 0 : index
    %1 = vector.load %arg1[%c0_1, %c0_2] : memref<256x48xbf16, #tpu.memory_space<vmem>>, vector<256x48xbf16>
    %c0_3 = arith.constant 0 : index
    %c0_4 = arith.constant 0 : index
    %2 = vector.load %arg2[%c0_3, %c0_4] : memref<48x128xbf16, #tpu.memory_space<vmem>>, vector<48x128xbf16>
    %cst = arith.constant dense<0.000000e+00> : vector<256x128xf32>
    %3 = tpu.matmul %1, %2, %cst {dimension_numbers = #tpu.dot_dimension_numbers<[1], [0], [0], [1], [0, 0, 1, 1], [], []>} : vector<256x48xbf16>, vector<48x128xbf16>, vector<256x128xf32> -> vector<256x128xf32>
    %4 = arith.truncf %3 : vector<256x128xf32> to vector<256x128xbf16>
    %cst_5 = arith.constant dense<0.000000e+00> : vector<256x128xf32>
    %5 = tpu.matmul %0, %4, %cst_5 {dimension_numbers = #tpu.dot_dimension_numbers<[1], [0], [0], [1], [0, 0, 1, 1], [], []>} : vector<256x256xbf16>, vector<256x128xbf16>, vector<256x128xf32> -> vector<256x128xf32>
    %c0_6 = arith.constant 0 : index
    %c0_7 = arith.constant 0 : index
    %6 = vector.load %arg3[%c0_6, %c0_7] : memref<1x128xf32, #tpu.memory_space<vmem>>, vector<1x128xf32>
    %7 = vector.broadcast %6 : vector<1x128xf32> to vector<256x128xf32>
    %8 = arith.addf %5, %7 : vector<256x128xf32>
    %cst_8 = arith.constant 0.000000e+00 : f32
    %9 = vector.broadcast %cst_8 : f32 to vector<256x128xf32>
    %10 = arith.maximumf %8, %9 : vector<256x128xf32>
    %11 = arith.truncf %10 : vector<256x128xf32> to vector<256x128xbf16>
    %c0_9 = arith.constant 0 : index
    %c0_10 = arith.constant 0 : index
    %12 = vector.load %arg4[%c0_9, %c0_10] : memref<128x128xbf16, #tpu.memory_space<vmem>>, vector<128x128xbf16>
    %cst_11 = arith.constant dense<0.000000e+00> : vector<256x128xf32>
    %13 = tpu.matmul %11, %12, %cst_11 {dimension_numbers = #tpu.dot_dimension_numbers<[1], [0], [0], [1], [0, 0, 1, 1], [], []>} : vector<256x128xbf16>, vector<128x128xbf16>, vector<256x128xf32> -> vector<256x128xf32>
    %14 = arith.truncf %13 : vector<256x128xf32> to vector<256x128xbf16>
    %cst_12 = arith.constant dense<0.000000e+00> : vector<256x128xf32>
    %15 = tpu.matmul %0, %14, %cst_12 {dimension_numbers = #tpu.dot_dimension_numbers<[1], [0], [0], [1], [0, 0, 1, 1], [], []>} : vector<256x256xbf16>, vector<256x128xbf16>, vector<256x128xf32> -> vector<256x128xf32>
    %c0_13 = arith.constant 0 : index
    %c0_14 = arith.constant 0 : index
    %16 = vector.load %arg5[%c0_13, %c0_14] : memref<1x128xf32, #tpu.memory_space<vmem>>, vector<1x128xf32>
    %17 = vector.broadcast %16 : vector<1x128xf32> to vector<256x128xf32>
    %18 = arith.addf %15, %17 : vector<256x128xf32>
    %19 = arith.truncf %18 : vector<256x128xf32> to vector<256x128xbf16>
    %c0_15 = arith.constant 0 : index
    %c0_16 = arith.constant 0 : index
    %20 = vector.load %arg6[%c0_15, %c0_16] : memref<128x128xbf16, #tpu.memory_space<vmem>>, vector<128x128xbf16>
    %cst_17 = arith.constant dense<0.000000e+00> : vector<256x128xf32>
    %21 = tpu.matmul %19, %20, %cst_17 {dimension_numbers = #tpu.dot_dimension_numbers<[1], [0], [0], [1], [0, 0, 1, 1], [], []>} : vector<256x128xbf16>, vector<128x128xbf16>, vector<256x128xf32> -> vector<256x128xf32>
    %c0_18 = arith.constant 0 : index
    %c0_19 = arith.constant 0 : index
    %22 = vector.load %arg7[%c0_18, %c0_19] : memref<1x128xf32, #tpu.memory_space<vmem>>, vector<1x128xf32>
    %23 = vector.broadcast %22 : vector<1x128xf32> to vector<256x128xf32>
    %24 = arith.addf %21, %23 : vector<256x128xf32>
    %c0_20 = arith.constant 0 : index
    %c0_21 = arith.constant 0 : index
    %25 = vector.load %arg8[%c0_20, %c0_21] : memref<256x128xf32, #tpu.memory_space<vmem>>, vector<256x128xf32>
    tpu.vector_store %arg8[%c0_20, %c0_21], %24 {strides = array<i32>} : memref<256x128xf32, #tpu.memory_space<vmem>>, vector<256x128xf32>,
    return
  }
}

</mosaic_0001>

<llo_original>
// kernel: tpu_custom_call.1
$region0: #{tpu_custom_call.1}
  #allocation0 [shape = 'u32[]', space=smem, size = 0x4, offset = 0x4, fixed_abs, tag = 'smem constant byte address 0x4 - core index']
  #allocation1 [shape = 'u32[144,128]{1,0:T(1,128)}', space=vmem, size = 0x12000, scoped, tag = 'internal scratch']
  %s0 = inlined_call_operand.hbm [shape: bf16[256,256], index: 0, kind: input, shape index: {}]
  %s1 = inlined_call_operand.vmem [shape: bf16[256,48], index: 1, kind: input, shape index: {}]
  %s2 = inlined_call_operand.vmem [shape: bf16[48,128], index: 2, kind: input, shape index: {}]
  %s3 = inlined_call_operand.vmem [shape: f32[1,128], index: 3, kind: input, shape index: {}]
  %s4 = inlined_call_operand.vmem [shape: bf16[128,128], index: 4, kind: input, shape index: {}]
  %s5 = inlined_call_operand.vmem [shape: f32[1,128], index: 5, kind: input, shape index: {}]
  %s6 = inlined_call_operand.vmem [shape: bf16[128,128], index: 6, kind: input, shape index: {}]
  %s7 = inlined_call_operand.vmem [shape: f32[1,128], index: 7, kind: input, shape index: {}]
  %s8 = inlined_call_operand.hbm [shape: f32[256,128], index: 8, kind: output, shape index: {}]
  %s9 = sld [smem:[#allocation0]]
  $region46: #{tpu_custom_call.1} parent=0
    _
  %s11 = ssub.s32 1, %s9
  %s12 = scalar_select 0, %s11, %s9
  $region1: #{tpu_custom_call.1} parent=0
    #allocation2 [shape = 'u8[131072]{0}', space=vmem, size = 0x20000, scoped, tag = 'input window, operand 0, single buffered']
    #allocation3 [shape = 's32[1]{0}', space=sflag, size = 0x4, scoped, tag = 'scoped memory for tpu_custom_call.1']
    #allocation4 [shape = 's32[1]{0}', space=sflag, size = 0x4, scoped, tag = 'scoped memory for tpu_custom_call.1']
    #allocation5 [shape = 'u8[131072]{0}', space=vmem, size = 0x20000, scoped, tag = 'output window, operand 0, single buffered']
    %13 = vsyncpa [#allocation3], 0
    %14 = vsyncpa [#allocation4], 0
    // Predicated region
    $region2: #{tpu_custom_call.1} parent=1 // pred_check
      _
    $region3: #{tpu_custom_call.1} parent=1 // pred_check_branch
      %16 = sbr.rel (0) target = $region5
    $region4: #{tpu_custom_call.1} parent=1 // pred_region
      %s18 = ssub.s32 4096, 4096
      %19 = vsyncadd [#allocation3], %s18
      %s20 = sshll.u32 [#allocation2], 4
      %s21 = int_to_ptr.vmem [resolvable:$true] %s20
      %26 = dma.hbm_to_vmem [thread:$0]  %s0, 4096, %s21, [#allocation3], 128, 128, 8
    $region5: #{tpu_custom_call.1} parent=1 // pred_fallthru
      _
    // Predicated region
    $region6: #{tpu_custom_call.1} parent=1 // pred_check
      _
    $region7: #{tpu_custom_call.1} parent=1 // pred_check_branch
      %28 = sbr.rel (0) target = $region9
    $region8: #{tpu_custom_call.1} parent=1 // pred_region
      _
    $region9: #{tpu_custom_call.1} parent=1 // pred_fallthru
      _
    // Predicated region
    $region10: #{tpu_custom_call.1} parent=1 // pred_check
      _
    $region11: #{tpu_custom_call.1} parent=1 // pred_check_branch
      %30 = sbr.rel (0) target = $region13
    $region12: #{tpu_custom_call.1} parent=1 // pred_region
      _
    $region13: #{tpu_custom_call.1} parent=1 // pred_fallthru
      _
    // Predicated region
    $region14: #{tpu_custom_call.1} parent=1 // pred_check
      _
    $region15: #{tpu_custom_call.1} parent=1 // pred_check_branch
      %32 = sbr.rel (0) target = $region17
    $region16: #{tpu_custom_call.1} parent=1 // pred_region
      _
    $region17: #{tpu_custom_call.1} parent=1 // pred_fallthru
      _
    // Predicated region
    $region18: #{tpu_custom_call.1} parent=1 // pred_check
      _
    $region19: #{tpu_custom_call.1} parent=1 // pred_check_branch
      %34 = sbr.rel (0) target = $region21
    $region20: #{tpu_custom_call.1} parent=1 // pred_region
      _
    $region21: #{tpu_custom_call.1} parent=1 // pred_fallthru
      _
    // Predicated region
    $region22: #{tpu_custom_call.1} parent=1 // pred_check
      _
    $region23: #{tpu_custom_call.1} parent=1 // pred_check_branch
      %36 = sbr.rel (0) target = $region25
    $region24: #{tpu_custom_call.1} parent=1 // pred_region
      _
    $region25: #{tpu_custom_call.1} parent=1 // pred_fallthru
      _
    // Predicated region
    $region26: #{tpu_custom_call.1} parent=1 // pred_check
      _
    $region27: #{tpu_custom_call.1} parent=1 // pred_check_branch
      %38 = sbr.rel (0) target = $region29
    $region28: #{tpu_custom_call.1} parent=1 // pred_region
      _
    $region29: #{tpu_custom_call.1} parent=1 // pred_fallthru
      _
    // Predicated region
    $region30: #{tpu_custom_call.1} parent=1 // pred_check
      _
    $region31: #{tpu_custom_call.1} parent=1 // pred_check_branch
      %40 = sbr.rel (0) target = $region33
    $region32: #{tpu_custom_call.1} parent=1 // pred_region
      _
    $region33: #{tpu_custom_call.1} parent=1 // pred_fallthru
      _
    // Predicated region
    $region34: #{tpu_custom_call.1} parent=1 // pred_check
      _
    $region35: #{tpu_custom_call.1} parent=1 // pred_check_branch
      %42 = sbr.rel (0) target = $region37
    $region36: #{tpu_custom_call.1} parent=1 // pred_region
      %43 = dma.done [#allocation3], 4096
    $region37: #{tpu_custom_call.1} parent=1 // pred_fallthru
      _
    %v45 = vld [vmem:[#allocation2] sm:$0xff]
    %v46 = vld [vmem:[#allocation2 + $0x8] sm:$0xff]
    %v47 = vld [vmem:[#allocation2 + $0x10] sm:$0xff]
    %v48 = vld [vmem:[#allocation2 + $0x18] sm:$0xff]
    %v49 = vld [vmem:[#allocation2 + $0x20] sm:$0xff]
    %v50 = vld [vmem:[#allocation2 + $0x28] sm:$0xff]
    %v51 = vld [vmem:[#allocation2 + $0x30] sm:$0xff]
    %v52 = vld [vmem:[#allocation2 + $0x38] sm:$0xff]
    %v53 = vld [vmem:[#allocation2 + $0x40] sm:$0xff]
    %v54 = vld [vmem:[#allocation2 + $0x48] sm:$0xff]
    %v55 = vld [vmem:[#allocation2 + $0x50] sm:$0xff]
    %v56 = vld [vmem:[#allocation2 + $0x58] sm:$0xff]
    %v57 = vld [vmem:[#allocation2 + $0x60] sm:$0xff]
    %v58 = vld [vmem:[#allocation2 + $0x68] sm:$0xff]
    %v59 = vld [vmem:[#allocation2 + $0x70] sm:$0xff]
    %v60 = vld [vmem:[#allocation2 + $0x78] sm:$0xff]
    %v61 = vld [vmem:[#allocation2 + $0x80] sm:$0xff]
    %v62 = vld [vmem:[#allocation2 + $0x88] sm:$0xff]
    %v63 = vld [vmem:[#allocation2 + $0x90] sm:$0xff]
    %v64 = vld [vmem:[#allocation2 + $0x98] sm:$0xff]
    %v65 = vld [vmem:[#allocation2 + $0xa0] sm:$0xff]
    %v66 = vld [vmem:[#allocation2 + $0xa8] sm:$0xff]
    %v67 = vld [vmem:[#allocation2 + $0xb0] sm:$0xff]
    %v68 = vld [vmem:[#allocation2 + $0xb8] sm:$0xff]
    %v69 = vld [vmem:[#allocation2 + $0xc0] sm:$0xff]
    %v70 = vld [vmem:[#allocation2 + $0xc8] sm:$0xff]
    %v71 = vld [vmem:[#allocation2 + $0xd0] sm:$0xff]
    %v72 = vld [vmem:[#allocation2 + $0xd8] sm:$0xff]
    %v73 = vld [vmem:[#allocation2 + $0xe0] sm:$0xff]
    %v74 = vld [vmem:[#allocation2 + $0xe8] sm:$0xff]
    %v75 = vld [vmem:[#allocation2 + $0xf0] sm:$0xff]
    %v76 = vld [vmem:[#allocation2 + $0xf8] sm:$0xff]
    %v77 = vld [vmem:[%s1] sm:$0xf]
    %v78 = vld [vmem:[%s1 + $0x4] sm:$0xf]
    %v79 = vld [vmem:[%s1 + $0x8] sm:$0xf]
    %v80 = vld [vmem:[%s1 + $0xc] sm:$0xf]
    %v81 = vld [vmem:[%s1 + $0x10] sm:$0xf]
    %v82 = vld [vmem:[%s1 + $0x14] sm:$0xf]
    %v83 = vld [vmem:[%s1 + $0x18] sm:$0xf]
    %v84 = vld [vmem:[%s1 + $0x1c] sm:$0xf]
    %v85 = vld [vmem:[%s1 + $0x20] sm:$0xf]
    %v86 = vld [vmem:[%s1 + $0x24] sm:$0xf]
    %v87 = vld [vmem:[%s1 + $0x28] sm:$0xf]
    %v88 = vld [vmem:[%s1 + $0x2c] sm:$0xf]
    %v89 = vld [vmem:[%s1 + $0x30] sm:$0xf]
    %v90 = vld [vmem:[%s1 + $0x34] sm:$0xf]
    %v91 = vld [vmem:[%s1 + $0x38] sm:$0xf]
    %v92 = vld [vmem:[%s1 + $0x3c] sm:$0xf]
    %v93 = vld [vmem:[%s1 + $0x40] sm:$0xf]
    %v94 = vld [vmem:[%s1 + $0x44] sm:$0xf]
    %v95 = vld [vmem:[%s1 + $0x48] sm:$0xf]
    %v96 = vld [vmem:[%s1 + $0x4c] sm:$0xf]
    %v97 = vld [vmem:[%s1 + $0x50] sm:$0xf]
    %v98 = vld [vmem:[%s1 + $0x54] sm:$0xf]
    %v99 = vld [vmem:[%s1 + $0x58] sm:$0xf]
    %v100 = vld [vmem:[%s1 + $0x5c] sm:$0xf]
    %v101 = vld [vmem:[%s1 + $0x60] sm:$0xf]
    %v102 = vld [vmem:[%s1 + $0x64] sm:$0xf]
    %v103 = vld [vmem:[%s1 + $0x68] sm:$0xf]
    %v104 = vld [vmem:[%s1 + $0x6c] sm:$0xf]
    %v105 = vld [vmem:[%s1 + $0x70] sm:$0xf]
    %v106 = vld [vmem:[%s1 + $0x74] sm:$0xf]
    %v107 = vld [vmem:[%s1 + $0x78] sm:$0xf]
    %v108 = vld [vmem:[%s1 + $0x7c] sm:$0xf]
    %v109 = vld [vmem:[%s2] sm:$0xf]
    %v110 = vld [vmem:[%s2 + $0x4] sm:$0xf]
    %v111 = vld [vmem:[%s2 + $0x8] sm:$0xf]
    %v112 = vld [vmem:[%s2 + $0xc] sm:$0xf]
    %v113 = vld [vmem:[%s2 + $0x10] sm:$0xf]
    %v114 = vld [vmem:[%s2 + $0x14] sm:$0xf]
    %v147 = vunpack.c.l.b16 %v77
    %v148 = vunpack.c.l.b16 %v78
    %v149 = vunpack.c.l.b16 %v79
    %v150 = vunpack.c.l.b16 %v80
    %v151 = vunpack.c.l.b16 %v81
    %v152 = vunpack.c.l.b16 %v82
    %v153 = vunpack.c.l.b16 %v83
    %v154 = vunpack.c.l.b16 %v84
    %v155 = vunpack.c.l.b16 %v85
    %v156 = vunpack.c.l.b16 %v86
    %v157 = vunpack.c.l.b16 %v87
    %v158 = vunpack.c.l.b16 %v88
    %v159 = vunpack.c.l.b16 %v89
    %v160 = vunpack.c.l.b16 %v90
    %v161 = vunpack.c.l.b16 %v91
    %v162 = vunpack.c.l.b16 %v92
    %v163 = vunpack.c.l.b16 %v93
    %v164 = vunpack.c.l.b16 %v94
    %v165 = vunpack.c.l.b16 %v95
    %v166 = vunpack.c.l.b16 %v96
    %v167 = vunpack.c.l.b16 %v97
    %v168 = vunpack.c.l.b16 %v98
    %v169 = vunpack.c.l.b16 %v99
    %v170 = vunpack.c.l.b16 %v100
    %v171 = vunpack.c.l.b16 %v101
    %v172 = vunpack.c.l.b16 %v102
    %v173 = vunpack.c.l.b16 %v103
    %v174 = vunpack.c.l.b16 %v104
    %v175 = vunpack.c.l.b16 %v105
    %v176 = vunpack.c.l.b16 %v106
    %v177 = vunpack.c.l.b16 %v107
    %v178 = vunpack.c.l.b16 %v108
    %v179 = vpack.c.b16 %v148, %v147
    %v180 = vpack.c.b16 %v150, %v149
    %v181 = vpack.c.b16 %v152, %v151
    %v182 = vpack.c.b16 %v154, %v153
    %v183 = vpack.c.b16 %v156, %v155
    %v184 = vpack.c.b16 %v158, %v157
    %v185 = vpack.c.b16 %v160, %v159
    %v186 = vpack.c.b16 %v162, %v161
    %v187 = vpack.c.b16 %v164, %v163
    %v188 = vpack.c.b16 %v166, %v165
    %v189 = vpack.c.b16 %v168, %v167
    %v190 = vpack.c.b16 %v170, %v169
    %v191 = vpack.c.b16 %v172, %v171
    %v192 = vpack.c.b16 %v174, %v173
    %v193 = vpack.c.b16 %v176, %v175
    %v194 = vpack.c.b16 %v178, %v177
    %v201 = vunpack.c.l.b16 %v109
    %v202 = vunpack.c.l.b16 %v110
    %v203 = vunpack.c.l.b16 %v111
    %v204 = vunpack.c.l.b16 %v112
    %v205 = vunpack.c.l.b16 %v113
    %v206 = vunpack.c.l.b16 %v114
    %v207 = vpack.c.b16 %v202, %v201
    %v208 = vpack.c.b16 %v204, %v203
    %v209 = vpack.c.b16 %v206, %v205
    %vm213 = vcmask 392192
    %v215 = vsel %vm213, %v179, 0
    %v218 = vsel %vm213, %v180, 0
    %v221 = vsel %vm213, %v181, 0
    %v224 = vsel %vm213, %v182, 0
    %v227 = vsel %vm213, %v183, 0
    %v230 = vsel %vm213, %v184, 0
    %v233 = vsel %vm213, %v185, 0
    %v236 = vsel %vm213, %v186, 0
    %v239 = vsel %vm213, %v187, 0
    %v242 = vsel %vm213, %v188, 0
    %v245 = vsel %vm213, %v189, 0
    %v248 = vsel %vm213, %v190, 0
    %v251 = vsel %vm213, %v191, 0
    %v254 = vsel %vm213, %v192, 0
    %v257 = vsel %vm213, %v193, 0
    %v260 = vsel %vm213, %v194, 0
    %262 = vmatprep.subr.bf16.mxu0 0
    %263 = vmatpush1.bf16.msra.mxu0 %v207
    %264 = vmatprep.subr.bf16.mxu0 0
    %265 = vmatpush1.bf16.msra.mxu0 %v208
    %266 = vmatprep.subr.bf16.mxu0 0
    %267 = vmatpush1.bf16.msra.mxu0 %v209
    %268 = vmatprep.subr.bf16.mxu0 0
    %269 = vmatpush1.bf16.msra.mxu0 0
    %270 = vmatprep.subr.bf16.mxu0 0
    %271 = vmatpush1.bf16.msra.mxu0 0
    %272 = vmatprep.subr.bf16.mxu0 0
    %273 = vmatpush1.bf16.msra.mxu0 0
    %274 = vmatprep.subr.bf16.mxu0 0
    %275 = vmatpush1.bf16.msra.mxu0 0
    %276 = vmatprep.subr.bf16.mxu0 0
    %277 = vmatpush1.bf16.msra.mxu0 0
    %278 = vmatprep.subr.bf16.mxu0 0
    %279 = vmatpush1.bf16.msra.mxu0 0
    %280 = vmatprep.subr.bf16.mxu0 0
    %281 = vmatpush1.bf16.msra.mxu0 0
    %282 = vmatprep.subr.bf16.mxu0 0
    %283 = vmatpush1.bf16.msra.mxu0 0
    %284 = vmatprep.subr.bf16.mxu0 0
    %285 = vmatpush1.bf16.msra.mxu0 0
    %286 = vmatprep.subr.bf16.mxu0 0
    %287 = vmatpush1.bf16.msra.mxu0 0
    %288 = vmatprep.subr.bf16.mxu0 0
    %289 = vmatpush1.bf16.msra.mxu0 0
    %290 = vmatprep.subr.bf16.mxu0 0
    %291 = vmatpush1.bf16.msra.mxu0 0
    %292 = vmatprep.subr.bf16.mxu0 0
    %293 = vmatpush1.bf16.msra.mxu0 0
    %294 = vmatprep.mubr.bf16.mxu0 0
    %295 = vmatmul.mubr.bf16.gmra.mrb[0].mxu0 %v215
    %v296 = vpop.f32.mrb[0].mxu0
    %v297 = vadd.f32 0.0, %v296
    %v298 = vpop.f32.mrb[0].mxu0
    %v299 = vpop.f32.mrb[0].mxu0
    %v300 = vadd.f32 0.0, %v299
    %v301 = vpop.f32.mrb[0].mxu0
    %302 = vmatprep.mubr.bf16.mxu0 0
    %303 = vmatmul.mubr.bf16.gmra.mrb[0].mxu0 %v218
    %v304 = vpop.f32.mrb[0].mxu0
    %v305 = vadd.f32 0.0, %v304
    %v306 = vpop.f32.mrb[0].mxu0
    %v307 = vpop.f32.mrb[0].mxu0
    %v308 = vadd.f32 0.0, %v307
    %v309 = vpop.f32.mrb[0].mxu0
    %310 = vmatprep.mubr.bf16.mxu0 0
    %311 = vmatmul.mubr.bf16.gmra.mrb[0].mxu0 %v221
    %v312 = vpop.f32.mrb[0].mxu0
    %v313 = vadd.f32 0.0, %v312
    %v314 = vpop.f32.mrb[0].mxu0
    %v315 = vpop.f32.mrb[0].mxu0
    %v316 = vadd.f32 0.0, %v315
    %v317 = vpop.f32.mrb[0].mxu0
    %318 = vmatprep.mubr.bf16.mxu0 0
    %319 = vmatmul.mubr.bf16.gmra.mrb[0].mxu0 %v224
    %v320 = vpop.f32.mrb[0].mxu0
    %v321 = vadd.f32 0.0, %v320
    %v322 = vpop.f32.mrb[0].mxu0
    %v323 = vpop.f32.mrb[0].mxu0
    %v324 = vadd.f32 0.0, %v323
    %v325 = vpop.f32.mrb[0].mxu0
    %326 = vmatprep.mubr.bf16.mxu0 0
    %327 = vmatmul.mubr.bf16.gmra.mrb[0].mxu0 %v227
    %v328 = vpop.f32.mrb[0].mxu0
    %v329 = vadd.f32 0.0, %v328
    %v330 = vpop.f32.mrb[0].mxu0
    %v331 = vpop.f32.mrb[0].mxu0
    %v332 = vadd.f32 0.0, %v331
    %v333 = vpop.f32.mrb[0].mxu0
    %334 = vmatprep.mubr.bf16.mxu0 0
    %335 = vmatmul.mubr.bf16.gmra.mrb[0].mxu0 %v230
    %v336 = vpop.f32.mrb[0].mxu0
    %v337 = vadd.f32 0.0, %v336
    %v338 = vpop.f32.mrb[0].mxu0
    %v339 = vpop.f32.mrb[0].mxu0
    %v340 = vadd.f32 0.0, %v339
    %v341 = vpop.f32.mrb[0].mxu0
    %342 = vmatprep.mubr.bf16.mxu0 0
    %343 = vmatmul.mubr.bf16.gmra.mrb[0].mxu0 %v233
    %v344 = vpop.f32.mrb[0].mxu0
    %v345 = vadd.f32 0.0, %v344
    %v346 = vpop.f32.mrb[0].mxu0
    %v347 = vpop.f32.mrb[0].mxu0
    %v348 = vadd.f32 0.0, %v347
    %v349 = vpop.f32.mrb[0].mxu0
    %350 = vmatprep.mubr.bf16.mxu0 0
    %351 = vmatmul.mubr.bf16.gmra.mrb[0].mxu0 %v236
    %v352 = vpop.f32.mrb[0].mxu0
    %v353 = vadd.f32 0.0, %v352
    %v354 = vpop.f32.mrb[0].mxu0
    %v355 = vpop.f32.mrb[0].mxu0
    %v356 = vadd.f32 0.0, %v355
    %v357 = vpop.f32.mrb[0].mxu0
    %358 = vmatprep.mubr.bf16.mxu0 0
    %359 = vmatmul.mubr.bf16.gmra.mrb[0].mxu0 %v239
    %v360 = vpop.f32.mrb[0].mxu0
    %v361 = vadd.f32 0.0, %v360
    %v362 = vpop.f32.mrb[0].mxu0
    %v363 = vpop.f32.mrb[0].mxu0
    %v364 = vadd.f32 0.0, %v363
    %v365 = vpop.f32.mrb[0].mxu0
    %366 = vmatprep.mubr.bf16.mxu0 0
    %367 = vmatmul.mubr.bf16.gmra.mrb[0].mxu0 %v242
    %v368 = vpop.f32.mrb[0].mxu0
    %v369 = vadd.f32 0.0, %v368
    %v370 = vpop.f32.mrb[0].mxu0
    %v371 = vpop.f32.mrb[0].mxu0
    %v372 = vadd.f32 0.0, %v371
    %v373 = vpop.f32.mrb[0].mxu0
    %374 = vmatprep.mubr.bf16.mxu0 0
    %375 = vmatmul.mubr.bf16.gmra.mrb[0].mxu0 %v245
    %v376 = vpop.f32.mrb[0].mxu0
    %v377 = vadd.f32 0.0, %v376
    %v378 = vpop.f32.mrb[0].mxu0
    %v379 = vpop.f32.mrb[0].mxu0
    %v380 = vadd.f32 0.0, %v379
    %v381 = vpop.f32.mrb[0].mxu0
    %382 = vmatprep.mubr.bf16.mxu0 0
    %383 = vmatmul.mubr.bf16.gmra.mrb[0].mxu0 %v248
    %v384 = vpop.f32.mrb[0].mxu0
    %v385 = vadd.f32 0.0, %v384
    %v386 = vpop.f32.mrb[0].mxu0
    %v387 = vpop.f32.mrb[0].mxu0
    %v388 = vadd.f32 0.0, %v387
    %v389 = vpop.f32.mrb[0].mxu0
    %390 = vmatprep.mubr.bf16.mxu0 0
    %391 = vmatmul.mubr.bf16.gmra.mrb[0].mxu0 %v251
    %v392 = vpop.f32.mrb[0].mxu0
    %v393 = vadd.f32 0.0, %v392
    %v394 = vpop.f32.mrb[0].mxu0
    %v395 = vpop.f32.mrb[0].mxu0
    %v396 = vadd.f32 0.0, %v395
    %v397 = vpop.f32.mrb[0].mxu0
    %398 = vmatprep.mubr.bf16.mxu0 0
    %399 = vmatmul.mubr.bf16.gmra.mrb[0].mxu0 %v254
    %v400 = vpop.f32.mrb[0].mxu0
    %v401 = vadd.f32 0.0, %v400
    %v402 = vpop.f32.mrb[0].mxu0
    %v403 = vpop.f32.mrb[0].mxu0
    %v404 = vadd.f32 0.0, %v403
    %v405 = vpop.f32.mrb[0].mxu0
    %406 = vmatprep.mubr.bf16.mxu0 0
    %407 = vmatmul.mubr.bf16.gmra.mrb[0].mxu0 %v257
    %v408 = vpop.f32.mrb[0].mxu0
    %v409 = vadd.f32 0.0, %v408
    %v410 = vpop.f32.mrb[0].mxu0
    %v411 = vpop.f32.mrb[0].mxu0
    %v412 = vadd.f32 0.0, %v411
    %v413 = vpop.f32.mrb[0].mxu0
    %414 = vmatprep.mubr.bf16.mxu0 0
    %415 = vmatmul.mubr.bf16.gmra.mrb[0].mxu0 %v260
    %v416 = vpop.f32.mrb[0].mxu0
    %v417 = vadd.f32 0.0, %v416
    %v418 = vpop.f32.mrb[0].mxu0
    %v419 = vpop.f32.mrb[0].mxu0
    %v420 = vadd.f32 0.0, %v419
    %v421 = vpop.f32.mrb[0].mxu0
    %422 = vdwg.mxu0
    %v423 = vpack.c.bf16 %v300, %v297
    %v424 = vpack.c.bf16 %v308, %v305
    %v425 = vpack.c.bf16 %v316, %v313
    %v426 = vpack.c.bf16 %v324, %v321
    %v427 = vpack.c.bf16 %v332, %v329
    %v428 = vpack.c.bf16 %v340, %v337
    %v429 = vpack.c.bf16 %v348, %v345
    %v430 = vpack.c.bf16 %v356, %v353
    %v431 = vpack.c.bf16 %v364, %v361
    %v432 = vpack.c.bf16 %v372, %v369
    %v433 = vpack.c.bf16 %v380, %v377
    %v434 = vpack.c.bf16 %v388, %v385
    %v435 = vpack.c.bf16 %v396, %v393
    %v436 = vpack.c.bf16 %v404, %v401
    %v437 = vpack.c.bf16 %v412, %v409
    %v438 = vpack.c.bf16 %v420, %v417
    %v439 = vld [vmem:[%s3] sm:$0x1]
    %v441 = vlaneseq
    %v442 = vshrl.u32 %v441, 7
    %v443 = vsub.s32 0, %v442
    %v444 = vrot.slane %v439, %v443
    %v478 = vunpack.c.l.b16 %v45
    %v479 = vunpack.c.h.b16 %v45
    %v480 = vunpack.c.l.b16 %v46
    %v481 = vunpack.c.h.b16 %v46
    %v482 = vunpack.c.l.b16 %v47
    %v483 = vunpack.c.h.b16 %v47
    %v484 = vunpack.c.l.b16 %v48
    %v485 = vunpack.c.h.b16 %v48
    %v486 = vunpack.c.l.b16 %v49
    %v487 = vunpack.c.h.b16 %v49
    %v488 = vunpack.c.l.b16 %v50
    %v489 = vunpack.c.h.b16 %v50
    %v490 = vunpack.c.l.b16 %v51
    %v491 = vunpack.c.h.b16 %v51
    %v492 = vunpack.c.l.b16 %v52
    %v493 = vunpack.c.h.b16 %v52
    %v494 = vunpack.c.l.b16 %v53
    %v495 = vunpack.c.h.b16 %v53
    %v496 = vunpack.c.l.b16 %v54
    %v497 = vunpack.c.h.b16 %v54
    %v498 = vunpack.c.l.b16 %v55
    %v499 = vunpack.c.h.b16 %v55
    %v500 = vunpack.c.l.b16 %v56
    %v501 = vunpack.c.h.b16 %v56
    %v502 = vunpack.c.l.b16 %v57
    %v503 = vunpack.c.h.b16 %v57
    %v504 = vunpack.c.l.b16 %v58
    %v505 = vunpack.c.h.b16 %v58
    %v506 = vunpack.c.l.b16 %v59
    %v507 = vunpack.c.h.b16 %v59
    %v508 = vunpack.c.l.b16 %v60
    %v509 = vunpack.c.h.b16 %v60
    %v510 = vunpack.c.l.b16 %v61
    %v511 = vunpack.c.h.b16 %v61
    %v512 = vunpack.c.l.b16 %v62
    %v513 = vunpack.c.h.b16 %v62
    %v514 = vunpack.c.l.b16 %v63
    %v515 = vunpack.c.h.b16 %v63
    %v516 = vunpack.c.l.b16 %v64
    %v517 = vunpack.c.h.b16 %v64
    %v518 = vunpack.c.l.b16 %v65
    %v519 = vunpack.c.h.b16 %v65
    %v520 = vunpack.c.l.b16 %v66
    %v521 = vunpack.c.h.b16 %v66
    %v522 = vunpack.c.l.b16 %v67
    %v523 = vunpack.c.h.b16 %v67
    %v524 = vunpack.c.l.b16 %v68
    %v525 = vunpack.c.h.b16 %v68
    %v526 = vunpack.c.l.b16 %v69
    %v527 = vunpack.c.h.b16 %v69
    %v528 = vunpack.c.l.b16 %v70
    %v529 = vunpack.c.h.b16 %v70
    %v530 = vunpack.c.l.b16 %v71
    %v531 = vunpack.c.h.b16 %v71
    %v532 = vunpack.c.l.b16 %v72
    %v533 = vunpack.c.h.b16 %v72
    %v534 = vunpack.c.l.b16 %v73
    %v535 = vunpack.c.h.b16 %v73
    %v536 = vunpack.c.l.b16 %v74
    %v537 = vunpack.c.h.b16 %v74
    %v538 = vunpack.c.l.b16 %v75
    %v539 = vunpack.c.h.b16 %v75
    %v540 = vunpack.c.l.b16 %v76
    %v541 = vunpack.c.h.b16 %v76
    %v542 = vpack.c.b16 %v480, %v478
    %v543 = vpack.c.b16 %v481, %v479
    %v544 = vpack.c.b16 %v484, %v482
    %v545 = vpack.c.b16 %v485, %v483
    %v546 = vpack.c.b16 %v488, %v486
    %v547 = vpack.c.b16 %v489, %v487
    %v548 = vpack.c.b16 %v492, %v490
    %v549 = vpack.c.b16 %v493, %v491
    %v550 = vpack.c.b16 %v496, %v494
    %v551 = vpack.c.b16 %v497, %v495
    %v552 = vpack.c.b16 %v500, %v498
    %v553 = vpack.c.b16 %v501, %v499
    %v554 = vpack.c.b16 %v504, %v502
    %v555 = vpack.c.b16 %v505, %v503
    %v556 = vpack.c.b16 %v508, %v506
    %v557 = vpack.c.b16 %v509, %v507
    %v558 = vpack.c.b16 %v512, %v510
    %v559 = vpack.c.b16 %v513, %v511
    %v560 = vpack.c.b16 %v516, %v514
    %v561 = vpack.c.b16 %v517, %v515
    %v562 = vpack.c.b16 %v520, %v518
    %v563 = vpack.c.b16 %v521, %v519
    %v564 = vpack.c.b16 %v524, %v522
    %v565 = vpack.c.b16 %v525, %v523
    %v566 = vpack.c.b16 %v528, %v526
    %v567 = vpack.c.b16 %v529, %v527
    %v568 = vpack.c.b16 %v532, %v530
    %v569 = vpack.c.b16 %v533, %v531
    %v570 = vpack.c.b16 %v536, %v534
    %v571 = vpack.c.b16 %v537, %v535
    %v572 = vpack.c.b16 %v540, %v538
    %v573 = vpack.c.b16 %v541, %v539
    %606 = vmatprep.subr.bf16.mxu0 0
    %607 = vmatpush1.bf16.msra.mxu0 %v423
    %608 = vmatprep.subr.bf16.mxu0 0
    %609 = vmatpush1.bf16.msra.mxu0 %v424
    %610 = vmatprep.subr.bf16.mxu0 0
    %611 = vmatpush1.bf16.msra.mxu0 %v425
    %612 = vmatprep.subr.bf16.mxu0 0
    %613 = vmatpush1.bf16.msra.mxu0 %v426
    %614 = vmatprep.subr.bf16.mxu0 0
    %615 = vmatpush1.bf16.msra.mxu0 %v427
    %616 = vmatprep.subr.bf16.mxu0 0
    %617 = vmatpush1.bf16.msra.mxu0 %v428
    %618 = vmatprep.subr.bf16.mxu0 0
    %619 = vmatpush1.bf16.msra.mxu0 %v429
    %620 = vmatprep.subr.bf16.mxu0 0
    %621 = vmatpush1.bf16.msra.mxu0 %v430
    %622 = vmatprep.subr.bf16.mxu0 0
    %623 = vmatpush1.bf16.msra.mxu0 %v431
    %624 = vmatprep.subr.bf16.mxu0 0
    %625 = vmatpush1.bf16.msra.mxu0 %v432
    %626 = vmatprep.subr.bf16.mxu0 0
    %627 = vmatpush1.bf16.msra.mxu0 %v433
    %628 = vmatprep.subr.bf16.mxu0 0
    %629 = vmatpush1.bf16.msra.mxu0 %v434
    %630 = vmatprep.subr.bf16.mxu0 0
    %631 = vmatpush1.bf16.msra.mxu0 %v435
    %632 = vmatprep.subr.bf16.mxu0 0
    %633 = vmatpush1.bf16.msra.mxu0 %v436
    %634 = vmatprep.subr.bf16.mxu0 0
    %635 = vmatpush1.bf16.msra.mxu0 %v437
    %636 = vmatprep.subr.bf16.mxu0 0
    %637 = vmatpush1.bf16.msra.mxu0 %v438
    %638 = vmatprep.mubr.bf16.mxu0 %v543
    %639 = vmatmul.mubr.bf16.gmra.mrb[0].mxu0 %v542
    %v640 = vpop.f32.mrb[0].mxu0
    %v641 = vadd.f32 %v444, %v640
    %v642 = vpop.f32.mrb[0].mxu0
    %v643 = vpop.f32.mrb[0].mxu0
    %v644 = vadd.f32 %v444, %v643
    %v645 = vpop.f32.mrb[0].mxu0
    %646 = vmatprep.mubr.bf16.mxu0 %v545
    %647 = vmatmul.mubr.bf16.gmra.mrb[0].mxu0 %v544
    %v648 = vpop.f32.mrb[0].mxu0
    %v649 = vadd.f32 %v444, %v648
    %v650 = vpop.f32.mrb[0].mxu0
    %v651 = vpop.f32.mrb[0].mxu0
    %v652 = vadd.f32 %v444, %v651
    %v653 = vpop.f32.mrb[0].mxu0
    %654 = vmatprep.mubr.bf16.mxu0 %v547
    %655 = vmatmul.mubr.bf16.gmra.mrb[0].mxu0 %v546
    %v656 = vpop.f32.mrb[0].mxu0
    %v657 = vadd.f32 %v444, %v656
    %v658 = vpop.f32.mrb[0].mxu0
    %v659 = vpop.f32.mrb[0].mxu0
    %v660 = vadd.f32 %v444, %v659
    %v661 = vpop.f32.mrb[0].mxu0
    %662 = vmatprep.mubr.bf16.mxu0 %v549
    %663 = vmatmul.mubr.bf16.gmra.mrb[0].mxu0 %v548
    %v664 = vpop.f32.mrb[0].mxu0
    %v665 = vadd.f32 %v444, %v664
    %v666 = vpop.f32.mrb[0].mxu0
    %v667 = vpop.f32.mrb[0].mxu0
    %v668 = vadd.f32 %v444, %v667
    %v669 = vpop.f32.mrb[0].mxu0
    %670 = vmatprep.mubr.bf16.mxu0 %v551
    %671 = vmatmul.mubr.bf16.gmra.mrb[0].mxu0 %v550
    %v672 = vpop.f32.mrb[0].mxu0
    %v673 = vadd.f32 %v444, %v672
    %v674 = vpop.f32.mrb[0].mxu0
    %v675 = vpop.f32.mrb[0].mxu0
    %v676 = vadd.f32 %v444, %v675
    %v677 = vpop.f32.mrb[0].mxu0
    %678 = vmatprep.mubr.bf16.mxu0 %v553
    %679 = vmatmul.mubr.bf16.gmra.mrb[0].mxu0 %v552
    %v680 = vpop.f32.mrb[0].mxu0
    %v681 = vadd.f32 %v444, %v680
    %v682 = vpop.f32.mrb[0].mxu0
    %v683 = vpop.f32.mrb[0].mxu0
    %v684 = vadd.f32 %v444, %v683
    %v685 = vpop.f32.mrb[0].mxu0
    %686 = vmatprep.mubr.bf16.mxu0 %v555
    %687 = vmatmul.mubr.bf16.gmra.mrb[0].mxu0 %v554
    %v688 = vpop.f32.mrb[0].mxu0
    %v689 = vadd.f32 %v444, %v688
    %v690 = vpop.f32.mrb[0].mxu0
    %v691 = vpop.f32.mrb[0].mxu0
    %v692 = vadd.f32 %v444, %v691
    %v693 = vpop.f32.mrb[0].mxu0
    %694 = vmatprep.mubr.bf16.mxu0 %v557
    %695 = vmatmul.mubr.bf16.gmra.mrb[0].mxu0 %v556
    %v696 = vpop.f32.mrb[0].mxu0
    %v697 = vadd.f32 %v444, %v696
    %v698 = vpop.f32.mrb[0].mxu0
    %v699 = vpop.f32.mrb[0].mxu0
    %v700 = vadd.f32 %v444, %v699
    %v701 = vpop.f32.mrb[0].mxu0
    %702 = vmatprep.mubr.bf16.mxu0 %v559
    %703 = vmatmul.mubr.bf16.gmra.mrb[0].mxu0 %v558
    %v704 = vpop.f32.mrb[0].mxu0
    %v705 = vadd.f32 %v444, %v704
    %v706 = vpop.f32.mrb[0].mxu0
    %v707 = vpop.f32.mrb[0].mxu0
    %v708 = vadd.f32 %v444, %v707
    %v709 = vpop.f32.mrb[0].mxu0
    %710 = vmatprep.mubr.bf16.mxu0 %v561
    %711 = vmatmul.mubr.bf16.gmra.mrb[0].mxu0 %v560
    %v712 = vpop.f32.mrb[0].mxu0
    %v713 = vadd.f32 %v444, %v712
    %v714 = vpop.f32.mrb[0].mxu0
    %v715 = vpop.f32.mrb[0].mxu0
    %v716 = vadd.f32 %v444, %v715
    %v717 = vpop.f32.mrb[0].mxu0
    %718 = vmatprep.mubr.bf16.mxu0 %v563
    %719 = vmatmul.mubr.bf16.gmra.mrb[0].mxu0 %v562
    %v720 = vpop.f32.mrb[0].mxu0
    %v721 = vadd.f32 %v444, %v720
    %v722 = vpop.f32.mrb[0].mxu0
    %v723 = vpop.f32.mrb[0].mxu0
    %v724 = vadd.f32 %v444, %v723
    %v725 = vpop.f32.mrb[0].mxu0
    %726 = vmatprep.mubr.bf16.mxu0 %v565
    %727 = vmatmul.mubr.bf16.gmra.mrb[0].mxu0 %v564
    %v728 = vpop.f32.mrb[0].mxu0
    %v729 = vadd.f32 %v444, %v728
    %v730 = vpop.f32.mrb[0].mxu0
    %v731 = vpop.f32.mrb[0].mxu0
    %v732 = vadd.f32 %v444, %v731
    %v733 = vpop.f32.mrb[0].mxu0
    %734 = vmatprep.mubr.bf16.mxu0 %v567
    %735 = vmatmul.mubr.bf16.gmra.mrb[0].mxu0 %v566
    %v736 = vpop.f32.mrb[0].mxu0
    %v737 = vadd.f32 %v444, %v736
    %v738 = vpop.f32.mrb[0].mxu0
    %v739 = vpop.f32.mrb[0].mxu0
    %v740 = vadd.f32 %v444, %v739
    %v741 = vpop.f32.mrb[0].mxu0
    %742 = vmatprep.mubr.bf16.mxu0 %v569
    %743 = vmatmul.mubr.bf16.gmra.mrb[0].mxu0 %v568
    %v744 = vpop.f32.mrb[0].mxu0
    %v745 = vadd.f32 %v444, %v744
    %v746 = vpop.f32.mrb[0].mxu0
    %v747 = vpop.f32.mrb[0].mxu0
    %v748 = vadd.f32 %v444, %v747
    %v749 = vpop.f32.mrb[0].mxu0
    %750 = vmatprep.mubr.bf16.mxu0 %v571
    %751 = vmatmul.mubr.bf16.gmra.mrb[0].mxu0 %v570
    %v752 = vpop.f32.mrb[0].mxu0
    %v753 = vadd.f32 %v444, %v752
    %v754 = vpop.f32.mrb[0].mxu0
    %v755 = vpop.f32.mrb[0].mxu0
    %v756 = vadd.f32 %v444, %v755
    %v757 = vpop.f32.mrb[0].mxu0
    %758 = vmatprep.mubr.bf16.mxu0 %v573
    %759 = vmatmul.mubr.bf16.gmra.mrb[0].mxu0 %v572
    %v760 = vpop.f32.mrb[0].mxu0
    %v761 = vadd.f32 %v444, %v760
    %v762 = vpop.f32.mrb[0].mxu0
    %v763 = vpop.f32.mrb[0].mxu0
    %v764 = vadd.f32 %v444, %v763
    %v765 = vpop.f32.mrb[0].mxu0
    %766 = vdwg.mxu0
    %v767 = vmax.f32 %v641, 0.0
    %v768 = vmax.f32 %v644, 0.0
    %v769 = vmax.f32 %v649, 0.0
    %v770 = vmax.f32 %v652, 0.0
    %v771 = vmax.f32 %v657, 0.0
    %v772 = vmax.f32 %v660, 0.0
    %v773 = vmax.f32 %v665, 0.0
    %v774 = vmax.f32 %v668, 0.0
    %v775 = vmax.f32 %v673, 0.0
    %v776 = vmax.f32 %v676, 0.0
    %v777 = vmax.f32 %v681, 0.0
    %v778 = vmax.f32 %v684, 0.0
    %v779 = vmax.f32 %v689, 0.0
    %v780 = vmax.f32 %v692, 0.0
    %v781 = vmax.f32 %v697, 0.0
    %v782 = vmax.f32 %v700, 0.0
    %v783 = vmax.f32 %v705, 0.0
    %v784 = vmax.f32 %v708, 0.0
    %v785 = vmax.f32 %v713, 0.0
    %v786 = vmax.f32 %v716, 0.0
    %v787 = vmax.f32 %v721, 0.0
    %v788 = vmax.f32 %v724, 0.0
    %v789 = vmax.f32 %v729, 0.0
    %v790 = vmax.f32 %v732, 0.0
    %v791 = vmax.f32 %v737, 0.0
    %v792 = vmax.f32 %v740, 0.0
    %v793 = vmax.f32 %v745, 0.0
    %v794 = vmax.f32 %v748, 0.0
    %v795 = vmax.f32 %v753, 0.0
    %v796 = vmax.f32 %v756, 0.0
    %v797 = vmax.f32 %v761, 0.0
    %v798 = vmax.f32 %v764, 0.0
    %v799 = vpack.c.bf16 %v768, %v767
    %v800 = vpack.c.bf16 %v770, %v769
    %v801 = vpack.c.bf16 %v772, %v771
    %v802 = vpack.c.bf16 %v774, %v773
    %v803 = vpack.c.bf16 %v776, %v775
    %v804 = vpack.c.bf16 %v778, %v777
    %v805 = vpack.c.bf16 %v780, %v779
    %v806 = vpack.c.bf16 %v782, %v781
    %v807 = vpack.c.bf16 %v784, %v783
    %v808 = vpack.c.bf16 %v786, %v785
    %v809 = vpack.c.bf16 %v788, %v787
    %v810 = vpack.c.bf16 %v790, %v789
    %v811 = vpack.c.bf16 %v792, %v791
    %v812 = vpack.c.bf16 %v794, %v793
    %v813 = vpack.c.bf16 %v796, %v795
    %v814 = vpack.c.bf16 %v798, %v797
    %v815 = vld [vmem:[%s4] sm:$0xf]
    %v816 = vld [vmem:[%s4 + $0x4] sm:$0xf]
    %v817 = vld [vmem:[%s4 + $0x8] sm:$0xf]
    %v818 = vld [vmem:[%s4 + $0xc] sm:$0xf]
    %v819 = vld [vmem:[%s4 + $0x10] sm:$0xf]
    %v820 = vld [vmem:[%s4 + $0x14] sm:$0xf]
    %v821 = vld [vmem:[%s4 + $0x18] sm:$0xf]
    %v822 = vld [vmem:[%s4 + $0x1c] sm:$0xf]
    %v823 = vld [vmem:[%s4 + $0x20] sm:$0xf]
    %v824 = vld [vmem:[%s4 + $0x24] sm:$0xf]
    %v825 = vld [vmem:[%s4 + $0x28] sm:$0xf]
    %v826 = vld [vmem:[%s4 + $0x2c] sm:$0xf]
    %v827 = vld [vmem:[%s4 + $0x30] sm:$0xf]
    %v828 = vld [vmem:[%s4 + $0x34] sm:$0xf]
    %v829 = vld [vmem:[%s4 + $0x38] sm:$0xf]
    %v830 = vld [vmem:[%s4 + $0x3c] sm:$0xf]
    %v847 = vunpack.c.l.b16 %v815
    %v848 = vunpack.c.l.b16 %v816
    %v849 = vunpack.c.l.b16 %v817
    %v850 = vunpack.c.l.b16 %v818
    %v851 = vunpack.c.l.b16 %v819
    %v852 = vunpack.c.l.b16 %v820
    %v853 = vunpack.c.l.b16 %v821
    %v854 = vunpack.c.l.b16 %v822
    %v855 = vunpack.c.l.b16 %v823
    %v856 = vunpack.c.l.b16 %v824
    %v857 = vunpack.c.l.b16 %v825
    %v858 = vunpack.c.l.b16 %v826
    %v859 = vunpack.c.l.b16 %v827
    %v860 = vunpack.c.l.b16 %v828
    %v861 = vunpack.c.l.b16 %v829
    %v862 = vunpack.c.l.b16 %v830
    %v863 = vpack.c.b16 %v848, %v847
    %v864 = vpack.c.b16 %v850, %v849
    %v865 = vpack.c.b16 %v852, %v851
    %v866 = vpack.c.b16 %v854, %v853
    %v867 = vpack.c.b16 %v856, %v855
    %v868 = vpack.c.b16 %v858, %v857
    %v869 = vpack.c.b16 %v860, %v859
    %v870 = vpack.c.b16 %v862, %v861
    %879 = vmatprep.subr.bf16.mxu0 0
    %880 = vmatpush1.bf16.msra.mxu0 %v863
    %881 = vmatprep.subr.bf16.mxu0 0
    %882 = vmatpush1.bf16.msra.mxu0 %v864
    %883 = vmatprep.subr.bf16.mxu0 0
    %884 = vmatpush1.bf16.msra.mxu0 %v865
    %885 = vmatprep.subr.bf16.mxu0 0
    %886 = vmatpush1.bf16.msra.mxu0 %v866
    %887 = vmatprep.subr.bf16.mxu0 0
    %888 = vmatpush1.bf16.msra.mxu0 %v867
    %889 = vmatprep.subr.bf16.mxu0 0
    %890 = vmatpush1.bf16.msra.mxu0 %v868
    %891 = vmatprep.subr.bf16.mxu0 0
    %892 = vmatpush1.bf16.msra.mxu0 %v869
    %893 = vmatprep.subr.bf16.mxu0 0
    %894 = vmatpush1.bf16.msra.mxu0 %v870
    %895 = vmatprep.subr.bf16.mxu0 0
    %896 = vmatpush1.bf16.msra.mxu0 0
    %897 = vmatprep.subr.bf16.mxu0 0
    %898 = vmatpush1.bf16.msra.mxu0 0
    %899 = vmatprep.subr.bf16.mxu0 0
    %900 = vmatpush1.bf16.msra.mxu0 0
    %901 = vmatprep.subr.bf16.mxu0 0
    %902 = vmatpush1.bf16.msra.mxu0 0
    %903 = vmatprep.subr.bf16.mxu0 0
    %904 = vmatpush1.bf16.msra.mxu0 0
    %905 = vmatprep.subr.bf16.mxu0 0
    %906 = vmatpush1.bf16.msra.mxu0 0
    %907 = vmatprep.subr.bf16.mxu0 0
    %908 = vmatpush1.bf16.msra.mxu0 0
    %909 = vmatprep.subr.bf16.mxu0 0
    %910 = vmatpush1.bf16.msra.mxu0 0
    %911 = vmatprep.mubr.bf16.mxu0 0
    %912 = vmatmul.mubr.bf16.gmra.mrb[0].mxu0 %v799
    %v913 = vpop.f32.mrb[0].mxu0
    %v914 = vadd.f32 0.0, %v913
    %v915 = vpop.f32.mrb[0].mxu0
    %v916 = vpop.f32.mrb[0].mxu0
    %v917 = vadd.f32 0.0, %v916
    %v918 = vpop.f32.mrb[0].mxu0
    %919 = vmatprep.mubr.bf16.mxu0 0
    %920 = vmatmul.mubr.bf16.gmra.mrb[0].mxu0 %v800
    %v921 = vpop.f32.mrb[0].mxu0
    %v922 = vadd.f32 0.0, %v921
    %v923 = vpop.f32.mrb[0].mxu0
    %v924 = vpop.f32.mrb[0].mxu0
    %v925 = vadd.f32 0.0, %v924
    %v926 = vpop.f32.mrb[0].mxu0
    %927 = vmatprep.mubr.bf16.mxu0 0
    %928 = vmatmul.mubr.bf16.gmra.mrb[0].mxu0 %v801
    %v929 = vpop.f32.mrb[0].mxu0
    %v930 = vadd.f32 0.0, %v929
    %v931 = vpop.f32.mrb[0].mxu0
    %v932 = vpop.f32.mrb[0].mxu0
    %v933 = vadd.f32 0.0, %v932
    %v934 = vpop.f32.mrb[0].mxu0
    %935 = vmatprep.mubr.bf16.mxu0 0
    %936 = vmatmul.mubr.bf16.gmra.mrb[0].mxu0 %v802
    %v937 = vpop.f32.mrb[0].mxu0
    %v938 = vadd.f32 0.0, %v937
    %v939 = vpop.f32.mrb[0].mxu0
    %v940 = vpop.f32.mrb[0].mxu0
    %v941 = vadd.f32 0.0, %v940
    %v942 = vpop.f32.mrb[0].mxu0
    %943 = vmatprep.mubr.bf16.mxu0 0
    %944 = vmatmul.mubr.bf16.gmra.mrb[0].mxu0 %v803
    %v945 = vpop.f32.mrb[0].mxu0
    %v946 = vadd.f32 0.0, %v945
    %v947 = vpop.f32.mrb[0].mxu0
    %v948 = vpop.f32.mrb[0].mxu0
    %v949 = vadd.f32 0.0, %v948
    %v950 = vpop.f32.mrb[0].mxu0
    %951 = vmatprep.mubr.bf16.mxu0 0
    %952 = vmatmul.mubr.bf16.gmra.mrb[0].mxu0 %v804
    %v953 = vpop.f32.mrb[0].mxu0
    %v954 = vadd.f32 0.0, %v953
    %v955 = vpop.f32.mrb[0].mxu0
    %v956 = vpop.f32.mrb[0].mxu0
    %v957 = vadd.f32 0.0, %v956
    %v958 = vpop.f32.mrb[0].mxu0
    %959 = vmatprep.mubr.bf16.mxu0 0
    %960 = vmatmul.mubr.bf16.gmra.mrb[0].mxu0 %v805
    %v961 = vpop.f32.mrb[0].mxu0
    %v962 = vadd.f32 0.0, %v961
    %v963 = vpop.f32.mrb[0].mxu0
    %v964 = vpop.f32.mrb[0].mxu0
    %v965 = vadd.f32 0.0, %v964
    %v966 = vpop.f32.mrb[0].mxu0
    %967 = vmatprep.mubr.bf16.mxu0 0
    %968 = vmatmul.mubr.bf16.gmra.mrb[0].mxu0 %v806
    %v969 = vpop.f32.mrb[0].mxu0
    %v970 = vadd.f32 0.0, %v969
    %v971 = vpop.f32.mrb[0].mxu0
    %v972 = vpop.f32.mrb[0].mxu0
    %v973 = vadd.f32 0.0, %v972
    %v974 = vpop.f32.mrb[0].mxu0
    %975 = vmatprep.mubr.bf16.mxu0 0
    %976 = vmatmul.mubr.bf16.gmra.mrb[0].mxu0 %v807
    %v977 = vpop.f32.mrb[0].mxu0
    %v978 = vadd.f32 0.0, %v977
    %v979 = vpop.f32.mrb[0].mxu0
    %v980 = vpop.f32.mrb[0].mxu0
    %v981 = vadd.f32 0.0, %v980
    %v982 = vpop.f32.mrb[0].mxu0
    %983 = vmatprep.mubr.bf16.mxu0 0
    %984 = vmatmul.mubr.bf16.gmra.mrb[0].mxu0 %v808
    %v985 = vpop.f32.mrb[0].mxu0
    %v986 = vadd.f32 0.0, %v985
    %v987 = vpop.f32.mrb[0].mxu0
    %v988 = vpop.f32.mrb[0].mxu0
    %v989 = vadd.f32 0.0, %v988
    %v990 = vpop.f32.mrb[0].mxu0
    %991 = vmatprep.mubr.bf16.mxu0 0
    %992 = vmatmul.mubr.bf16.gmra.mrb[0].mxu0 %v809
    %v993 = vpop.f32.mrb[0].mxu0
    %v994 = vadd.f32 0.0, %v993
    %v995 = vpop.f32.mrb[0].mxu0
    %v996 = vpop.f32.mrb[0].mxu0
    %v997 = vadd.f32 0.0, %v996
    %v998 = vpop.f32.mrb[0].mxu0
    %999 = vmatprep.mubr.bf16.mxu0 0
    %1000 = vmatmul.mubr.bf16.gmra.mrb[0].mxu0 %v810
    %v1001 = vpop.f32.mrb[0].mxu0
    %v1002 = vadd.f32 0.0, %v1001
    %v1003 = vpop.f32.mrb[0].mxu0
    %v1004 = vpop.f32.mrb[0].mxu0
    %v1005 = vadd.f32 0.0, %v1004
    %v1006 = vpop.f32.mrb[0].mxu0
    %1007 = vmatprep.mubr.bf16.mxu0 0
    %1008 = vmatmul.mubr.bf16.gmra.mrb[0].mxu0 %v811
    %v1009 = vpop.f32.mrb[0].mxu0
    %v1010 = vadd.f32 0.0, %v1009
    %v1011 = vpop.f32.mrb[0].mxu0
    %v1012 = vpop.f32.mrb[0].mxu0
    %v1013 = vadd.f32 0.0, %v1012
    %v1014 = vpop.f32.mrb[0].mxu0
    %1015 = vmatprep.mubr.bf16.mxu0 0
    %1016 = vmatmul.mubr.bf16.gmra.mrb[0].mxu0 %v812
    %v1017 = vpop.f32.mrb[0].mxu0
    %v1018 = vadd.f32 0.0, %v1017
    %v1019 = vpop.f32.mrb[0].mxu0
    %v1020 = vpop.f32.mrb[0].mxu0
    %v1021 = vadd.f32 0.0, %v1020
    %v1022 = vpop.f32.mrb[0].mxu0
    %1023 = vmatprep.mubr.bf16.mxu0 0
    %1024 = vmatmul.mubr.bf16.gmra.mrb[0].mxu0 %v813
    %v1025 = vpop.f32.mrb[0].mxu0
    %v1026 = vadd.f32 0.0, %v1025
    %v1027 = vpop.f32.mrb[0].mxu0
    %v1028 = vpop.f32.mrb[0].mxu0
    %v1029 = vadd.f32 0.0, %v1028
    %v1030 = vpop.f32.mrb[0].mxu0
    %1031 = vmatprep.mubr.bf16.mxu0 0
    %1032 = vmatmul.mubr.bf16.gmra.mrb[0].mxu0 %v814
    %v1033 = vpop.f32.mrb[0].mxu0
    %v1034 = vadd.f32 0.0, %v1033
    %v1035 = vpop.f32.mrb[0].mxu0
    %v1036 = vpop.f32.mrb[0].mxu0
    %v1037 = vadd.f32 0.0, %v1036
    %v1038 = vpop.f32.mrb[0].mxu0
    %1039 = vdwg.mxu0
    %v1040 = vpack.c.bf16 %v917, %v914
    %v1041 = vpack.c.bf16 %v925, %v922
    %v1042 = vpack.c.bf16 %v933, %v930
    %v1043 = vpack.c.bf16 %v941, %v938
    %v1044 = vpack.c.bf16 %v949, %v946
    %v1045 = vpack.c.bf16 %v957, %v954
    %v1046 = vpack.c.bf16 %v965, %v962
    %v1047 = vpack.c.bf16 %v973, %v970
    %v1048 = vpack.c.bf16 %v981, %v978
    %v1049 = vpack.c.bf16 %v989, %v986
    %v1050 = vpack.c.bf16 %v997, %v994
    %v1051 = vpack.c.bf16 %v1005, %v1002
    %v1052 = vpack.c.bf16 %v1013, %v1010
    %v1053 = vpack.c.bf16 %v1021, %v1018
    %v1054 = vpack.c.bf16 %v1029, %v1026
    %v1055 = vpack.c.bf16 %v1037, %v1034
    %v1056 = vld [vmem:[%s5] sm:$0x1]
    %v1058 = vlaneseq
    %v1059 = vshrl.u32 %v1058, 7
    %v1060 = vsub.s32 0, %v1059
    %v1061 = vrot.slane %v1056, %v1060
    %1063 = vmatprep.subr.bf16.mxu0 0
    %1064 = vmatpush1.bf16.msra.mxu0 %v1040
    %1065 = vmatprep.subr.bf16.mxu0 0
    %1066 = vmatpush1.bf16.msra.mxu0 %v1041
    %1067 = vmatprep.subr.bf16.mxu0 0
    %1068 = vmatpush1.bf16.msra.mxu0 %v1042
    %1069 = vmatprep.subr.bf16.mxu0 0
    %1070 = vmatpush1.bf16.msra.mxu0 %v1043
    %1071 = vmatprep.subr.bf16.mxu0 0
    %1072 = vmatpush1.bf16.msra.mxu0 %v1044
    %1073 = vmatprep.subr.bf16.mxu0 0
    %1074 = vmatpush1.bf16.msra.mxu0 %v1045
    %1075 = vmatprep.subr.bf16.mxu0 0
    %1076 = vmatpush1.bf16.msra.mxu0 %v1046
    %1077 = vmatprep.subr.bf16.mxu0 0
    %1078 = vmatpush1.bf16.msra.mxu0 %v1047
    %1079 = vmatprep.subr.bf16.mxu0 0
    %1080 = vmatpush1.bf16.msra.mxu0 %v1048
    %1081 = vmatprep.subr.bf16.mxu0 0
    %1082 = vmatpush1.bf16.msra.mxu0 %v1049
    %1083 = vmatprep.subr.bf16.mxu0 0
    %1084 = vmatpush1.bf16.msra.mxu0 %v1050
    %1085 = vmatprep.subr.bf16.mxu0 0
    %1086 = vmatpush1.bf16.msra.mxu0 %v1051
    %1087 = vmatprep.subr.bf16.mxu0 0
    %1088 = vmatpush1.bf16.msra.mxu0 %v1052
    %1089 = vmatprep.subr.bf16.mxu0 0
    %1090 = vmatpush1.bf16.msra.mxu0 %v1053
    %1091 = vmatprep.subr.bf16.mxu0 0
    %1092 = vmatpush1.bf16.msra.mxu0 %v1054
    %1093 = vmatprep.subr.bf16.mxu0 0
    %1094 = vmatpush1.bf16.msra.mxu0 %v1055
    %1095 = vmatprep.mubr.bf16.mxu0 %v543
    %1096 = vmatmul.mubr.bf16.gmra.mrb[0].mxu0 %v542
    %v1097 = vpop.f32.mrb[0].mxu0
    %v1098 = vadd.f32 %v1061, %v1097
    %v1099 = vpop.f32.mrb[0].mxu0
    %v1100 = vpop.f32.mrb[0].mxu0
    %v1101 = vadd.f32 %v1061, %v1100
    %v1102 = vpop.f32.mrb[0].mxu0
    %1103 = vmatprep.mubr.bf16.mxu0 %v545
    %1104 = vmatmul.mubr.bf16.gmra.mrb[0].mxu0 %v544
    %v1105 = vpop.f32.mrb[0].mxu0
    %v1106 = vadd.f32 %v1061, %v1105
    %v1107 = vpop.f32.mrb[0].mxu0
    %v1108 = vpop.f32.mrb[0].mxu0
    %v1109 = vadd.f32 %v1061, %v1108
    %v1110 = vpop.f32.mrb[0].mxu0
    %1111 = vmatprep.mubr.bf16.mxu0 %v547
    %1112 = vmatmul.mubr.bf16.gmra.mrb[0].mxu0 %v546
    %v1113 = vpop.f32.mrb[0].mxu0
    %v1114 = vadd.f32 %v1061, %v1113
    %v1115 = vpop.f32.mrb[0].mxu0
    %v1116 = vpop.f32.mrb[0].mxu0
    %v1117 = vadd.f32 %v1061, %v1116
    %v1118 = vpop.f32.mrb[0].mxu0
    %1119 = vmatprep.mubr.bf16.mxu0 %v549
    %1120 = vmatmul.mubr.bf16.gmra.mrb[0].mxu0 %v548
    %v1121 = vpop.f32.mrb[0].mxu0
    %v1122 = vadd.f32 %v1061, %v1121
    %v1123 = vpop.f32.mrb[0].mxu0
    %v1124 = vpop.f32.mrb[0].mxu0
    %v1125 = vadd.f32 %v1061, %v1124
    %v1126 = vpop.f32.mrb[0].mxu0
    %1127 = vmatprep.mubr.bf16.mxu0 %v551
    %1128 = vmatmul.mubr.bf16.gmra.mrb[0].mxu0 %v550
    %v1129 = vpop.f32.mrb[0].mxu0
    %v1130 = vadd.f32 %v1061, %v1129
    %v1131 = vpop.f32.mrb[0].mxu0
    %v1132 = vpop.f32.mrb[0].mxu0
    %v1133 = vadd.f32 %v1061, %v1132
    %v1134 = vpop.f32.mrb[0].mxu0
    %1135 = vmatprep.mubr.bf16.mxu0 %v553
    %1136 = vmatmul.mubr.bf16.gmra.mrb[0].mxu0 %v552
    %v1137 = vpop.f32.mrb[0].mxu0
    %v1138 = vadd.f32 %v1061, %v1137
    %v1139 = vpop.f32.mrb[0].mxu0
    %v1140 = vpop.f32.mrb[0].mxu0
    %v1141 = vadd.f32 %v1061, %v1140
    %v1142 = vpop.f32.mrb[0].mxu0
    %1143 = vmatprep.mubr.bf16.mxu0 %v555
    %1144 = vmatmul.mubr.bf16.gmra.mrb[0].mxu0 %v554
    %v1145 = vpop.f32.mrb[0].mxu0
    %v1146 = vadd.f32 %v1061, %v1145
    %v1147 = vpop.f32.mrb[0].mxu0
    %v1148 = vpop.f32.mrb[0].mxu0
    %v1149 = vadd.f32 %v1061, %v1148
    %v1150 = vpop.f32.mrb[0].mxu0
    %1151 = vmatprep.mubr.bf16.mxu0 %v557
    %1152 = vmatmul.mubr.bf16.gmra.mrb[0].mxu0 %v556
    %v1153 = vpop.f32.mrb[0].mxu0
    %v1154 = vadd.f32 %v1061, %v1153
    %v1155 = vpop.f32.mrb[0].mxu0
    %v1156 = vpop.f32.mrb[0].mxu0
    %v1157 = vadd.f32 %v1061, %v1156
    %v1158 = vpop.f32.mrb[0].mxu0
    %1159 = vmatprep.mubr.bf16.mxu0 %v559
    %1160 = vmatmul.mubr.bf16.gmra.mrb[0].mxu0 %v558
    %v1161 = vpop.f32.mrb[0].mxu0
    %v1162 = vadd.f32 %v1061, %v1161
    %v1163 = vpop.f32.mrb[0].mxu0
    %v1164 = vpop.f32.mrb[0].mxu0
    %v1165 = vadd.f32 %v1061, %v1164
    %v1166 = vpop.f32.mrb[0].mxu0
    %1167 = vmatprep.mubr.bf16.mxu0 %v561
    %1168 = vmatmul.mubr.bf16.gmra.mrb[0].mxu0 %v560
    %v1169 = vpop.f32.mrb[0].mxu0
    %v1170 = vadd.f32 %v1061, %v1169
    %v1171 = vpop.f32.mrb[0].mxu0
    %v1172 = vpop.f32.mrb[0].mxu0
    %v1173 = vadd.f32 %v1061, %v1172
    %v1174 = vpop.f32.mrb[0].mxu0
    %1175 = vmatprep.mubr.bf16.mxu0 %v563
    %1176 = vmatmul.mubr.bf16.gmra.mrb[0].mxu0 %v562
    %v1177 = vpop.f32.mrb[0].mxu0
    %v1178 = vadd.f32 %v1061, %v1177
    %v1179 = vpop.f32.mrb[0].mxu0
    %v1180 = vpop.f32.mrb[0].mxu0
    %v1181 = vadd.f32 %v1061, %v1180
    %v1182 = vpop.f32.mrb[0].mxu0
    %1183 = vmatprep.mubr.bf16.mxu0 %v565
    %1184 = vmatmul.mubr.bf16.gmra.mrb[0].mxu0 %v564
    %v1185 = vpop.f32.mrb[0].mxu0
    %v1186 = vadd.f32 %v1061, %v1185
    %v1187 = vpop.f32.mrb[0].mxu0
    %v1188 = vpop.f32.mrb[0].mxu0
    %v1189 = vadd.f32 %v1061, %v1188
    %v1190 = vpop.f32.mrb[0].mxu0
    %1191 = vmatprep.mubr.bf16.mxu0 %v567
    %1192 = vmatmul.mubr.bf16.gmra.mrb[0].mxu0 %v566
    %v1193 = vpop.f32.mrb[0].mxu0
    %v1194 = vadd.f32 %v1061, %v1193
    %v1195 = vpop.f32.mrb[0].mxu0
    %v1196 = vpop.f32.mrb[0].mxu0
    %v1197 = vadd.f32 %v1061, %v1196
    %v1198 = vpop.f32.mrb[0].mxu0
    %1199 = vmatprep.mubr.bf16.mxu0 %v569
    %1200 = vmatmul.mubr.bf16.gmra.mrb[0].mxu0 %v568
    %v1201 = vpop.f32.mrb[0].mxu0
    %v1202 = vadd.f32 %v1061, %v1201
    %v1203 = vpop.f32.mrb[0].mxu0
    %v1204 = vpop.f32.mrb[0].mxu0
    %v1205 = vadd.f32 %v1061, %v1204
    %v1206 = vpop.f32.mrb[0].mxu0
    %1207 = vmatprep.mubr.bf16.mxu0 %v571
    %1208 = vmatmul.mubr.bf16.gmra.mrb[0].mxu0 %v570
    %v1209 = vpop.f32.mrb[0].mxu0
    %v1210 = vadd.f32 %v1061, %v1209
    %v1211 = vpop.f32.mrb[0].mxu0
    %v1212 = vpop.f32.mrb[0].mxu0
    %v1213 = vadd.f32 %v1061, %v1212
    %v1214 = vpop.f32.mrb[0].mxu0
    %1215 = vmatprep.mubr.bf16.mxu0 %v573
    %1216 = vmatmul.mubr.bf16.gmra.mrb[0].mxu0 %v572
    %v1217 = vpop.f32.mrb[0].mxu0
    %v1218 = vadd.f32 %v1061, %v1217
    %v1219 = vpop.f32.mrb[0].mxu0
    %v1220 = vpop.f32.mrb[0].mxu0
    %v1221 = vadd.f32 %v1061, %v1220
    %v1222 = vpop.f32.mrb[0].mxu0
    %1223 = vdwg.mxu0
    %v1224 = vpack.c.bf16 %v1101, %v1098
    %v1225 = vpack.c.bf16 %v1109, %v1106
    %v1226 = vpack.c.bf16 %v1117, %v1114
    %v1227 = vpack.c.bf16 %v1125, %v1122
    %v1228 = vpack.c.bf16 %v1133, %v1130
    %v1229 = vpack.c.bf16 %v1141, %v1138
    %v1230 = vpack.c.bf16 %v1149, %v1146
    %v1231 = vpack.c.bf16 %v1157, %v1154
    %v1232 = vpack.c.bf16 %v1165, %v1162
    %v1233 = vpack.c.bf16 %v1173, %v1170
    %v1234 = vpack.c.bf16 %v1181, %v1178
    %v1235 = vpack.c.bf16 %v1189, %v1186
    %v1236 = vpack.c.bf16 %v1197, %v1194
    %v1237 = vpack.c.bf16 %v1205, %v1202
    %v1238 = vpack.c.bf16 %v1213, %v1210
    %v1239 = vpack.c.bf16 %v1221, %v1218
    %v1240 = vld [vmem:[%s6] sm:$0xf]
    %v1241 = vld [vmem:[%s6 + $0x4] sm:$0xf]
    %v1242 = vld [vmem:[%s6 + $0x8] sm:$0xf]
    %v1243 = vld [vmem:[%s6 + $0xc] sm:$0xf]
    %v1244 = vld [vmem:[%s6 + $0x10] sm:$0xf]
    %v1245 = vld [vmem:[%s6 + $0x14] sm:$0xf]
    %v1246 = vld [vmem:[%s6 + $0x18] sm:$0xf]
    %v1247 = vld [vmem:[%s6 + $0x1c] sm:$0xf]
    %v1248 = vld [vmem:[%s6 + $0x20] sm:$0xf]
    %v1249 = vld [vmem:[%s6 + $0x24] sm:$0xf]
    %v1250 = vld [vmem:[%s6 + $0x28] sm:$0xf]
    %v1251 = vld [vmem:[%s6 + $0x2c] sm:$0xf]
    %v1252 = vld [vmem:[%s6 + $0x30] sm:$0xf]
    %v1253 = vld [vmem:[%s6 + $0x34] sm:$0xf]
    %v1254 = vld [vmem:[%s6 + $0x38] sm:$0xf]
    %v1255 = vld [vmem:[%s6 + $0x3c] sm:$0xf]
    %v1256 = vld [vmem:[%s7] sm:$0x1]
    %v1258 = vlaneseq
    %v1259 = vshrl.u32 %v1258, 7
    %v1260 = vsub.s32 0, %v1259
    %v1261 = vrot.slane %v1256, %v1260
    %v1279 = vunpack.c.l.b16 %v1240
    %v1280 = vunpack.c.l.b16 %v1241
    %v1281 = vunpack.c.l.b16 %v1242
    %v1282 = vunpack.c.l.b16 %v1243
    %v1283 = vunpack.c.l.b16 %v1244
    %v1284 = vunpack.c.l.b16 %v1245
    %v1285 = vunpack.c.l.b16 %v1246
    %v1286 = vunpack.c.l.b16 %v1247
    %v1287 = vunpack.c.l.b16 %v1248
    %v1288 = vunpack.c.l.b16 %v1249
    %v1289 = vunpack.c.l.b16 %v1250
    %v1290 = vunpack.c.l.b16 %v1251
    %v1291 = vunpack.c.l.b16 %v1252
    %v1292 = vunpack.c.l.b16 %v1253
    %v1293 = vunpack.c.l.b16 %v1254
    %v1294 = vunpack.c.l.b16 %v1255
    %v1295 = vpack.c.b16 %v1280, %v1279
    %v1296 = vpack.c.b16 %v1282, %v1281
    %v1297 = vpack.c.b16 %v1284, %v1283
    %v1298 = vpack.c.b16 %v1286, %v1285
    %v1299 = vpack.c.b16 %v1288, %v1287
    %v1300 = vpack.c.b16 %v1290, %v1289
    %v1301 = vpack.c.b16 %v1292, %v1291
    %v1302 = vpack.c.b16 %v1294, %v1293
    %1311 = vmatprep.subr.bf16.mxu0 0
    %1312 = vmatpush1.bf16.msra.mxu0 %v1295
    %1313 = vmatprep.subr.bf16.mxu0 0
    %1314 = vmatpush1.bf16.msra.mxu0 %v1296
    %1315 = vmatprep.subr.bf16.mxu0 0
    %1316 = vmatpush1.bf16.msra.mxu0 %v1297
    %1317 = vmatprep.subr.bf16.mxu0 0
    %1318 = vmatpush1.bf16.msra.mxu0 %v1298
    %1319 = vmatprep.subr.bf16.mxu0 0
    %1320 = vmatpush1.bf16.msra.mxu0 %v1299
    %1321 = vmatprep.subr.bf16.mxu0 0
    %1322 = vmatpush1.bf16.msra.mxu0 %v1300
    %1323 = vmatprep.subr.bf16.mxu0 0
    %1324 = vmatpush1.bf16.msra.mxu0 %v1301
    %1325 = vmatprep.subr.bf16.mxu0 0
    %1326 = vmatpush1.bf16.msra.mxu0 %v1302
    %1327 = vmatprep.subr.bf16.mxu0 0
    %1328 = vmatpush1.bf16.msra.mxu0 0
    %1329 = vmatprep.subr.bf16.mxu0 0
    %1330 = vmatpush1.bf16.msra.mxu0 0
    %1331 = vmatprep.subr.bf16.mxu0 0
    %1332 = vmatpush1.bf16.msra.mxu0 0
    %1333 = vmatprep.subr.bf16.mxu0 0
    %1334 = vmatpush1.bf16.msra.mxu0 0
    %1335 = vmatprep.subr.bf16.mxu0 0
    %1336 = vmatpush1.bf16.msra.mxu0 0
    %1337 = vmatprep.subr.bf16.mxu0 0
    %1338 = vmatpush1.bf16.msra.mxu0 0
    %1339 = vmatprep.subr.bf16.mxu0 0
    %1340 = vmatpush1.bf16.msra.mxu0 0
    %1341 = vmatprep.subr.bf16.mxu0 0
    %1342 = vmatpush1.bf16.msra.mxu0 0
    %1343 = vmatprep.mubr.bf16.mxu0 0
    %1344 = vmatmul.mubr.bf16.gmra.mrb[0].mxu0 %v1224
    %v1345 = vpop.f32.mrb[0].mxu0
    %v1346 = vadd.f32 %v1261, %v1345
    %v1347 = vpop.f32.mrb[0].mxu0
    %v1348 = vpop.f32.mrb[0].mxu0
    %v1349 = vadd.f32 %v1261, %v1348
    %v1350 = vpop.f32.mrb[0].mxu0
    %1351 = vmatprep.mubr.bf16.mxu0 0
    %1352 = vmatmul.mubr.bf16.gmra.mrb[0].mxu0 %v1225
    %v1353 = vpop.f32.mrb[0].mxu0
    %v1354 = vadd.f32 %v1261, %v1353
    %v1355 = vpop.f32.mrb[0].mxu0
    %v1356 = vpop.f32.mrb[0].mxu0
    %v1357 = vadd.f32 %v1261, %v1356
    %v1358 = vpop.f32.mrb[0].mxu0
    %1359 = vmatprep.mubr.bf16.mxu0 0
    %1360 = vmatmul.mubr.bf16.gmra.mrb[0].mxu0 %v1226
    %v1361 = vpop.f32.mrb[0].mxu0
    %v1362 = vadd.f32 %v1261, %v1361
    %v1363 = vpop.f32.mrb[0].mxu0
    %v1364 = vpop.f32.mrb[0].mxu0
    %v1365 = vadd.f32 %v1261, %v1364
    %v1366 = vpop.f32.mrb[0].mxu0
    %1367 = vmatprep.mubr.bf16.mxu0 0
    %1368 = vmatmul.mubr.bf16.gmra.mrb[0].mxu0 %v1227
    %v1369 = vpop.f32.mrb[0].mxu0
    %v1370 = vadd.f32 %v1261, %v1369
    %v1371 = vpop.f32.mrb[0].mxu0
    %v1372 = vpop.f32.mrb[0].mxu0
    %v1373 = vadd.f32 %v1261, %v1372
    %v1374 = vpop.f32.mrb[0].mxu0
    %1375 = vmatprep.mubr.bf16.mxu0 0
    %1376 = vmatmul.mubr.bf16.gmra.mrb[0].mxu0 %v1228
    %v1377 = vpop.f32.mrb[0].mxu0
    %v1378 = vadd.f32 %v1261, %v1377
    %v1379 = vpop.f32.mrb[0].mxu0
    %v1380 = vpop.f32.mrb[0].mxu0
    %v1381 = vadd.f32 %v1261, %v1380
    %v1382 = vpop.f32.mrb[0].mxu0
    %1383 = vmatprep.mubr.bf16.mxu0 0
    %1384 = vmatmul.mubr.bf16.gmra.mrb[0].mxu0 %v1229
    %v1385 = vpop.f32.mrb[0].mxu0
    %v1386 = vadd.f32 %v1261, %v1385
    %v1387 = vpop.f32.mrb[0].mxu0
    %v1388 = vpop.f32.mrb[0].mxu0
    %v1389 = vadd.f32 %v1261, %v1388
    %v1390 = vpop.f32.mrb[0].mxu0
    %1391 = vmatprep.mubr.bf16.mxu0 0
    %1392 = vmatmul.mubr.bf16.gmra.mrb[0].mxu0 %v1230
    %v1393 = vpop.f32.mrb[0].mxu0
    %v1394 = vadd.f32 %v1261, %v1393
    %v1395 = vpop.f32.mrb[0].mxu0
    %v1396 = vpop.f32.mrb[0].mxu0
    %v1397 = vadd.f32 %v1261, %v1396
    %v1398 = vpop.f32.mrb[0].mxu0
    %1399 = vmatprep.mubr.bf16.mxu0 0
    %1400 = vmatmul.mubr.bf16.gmra.mrb[0].mxu0 %v1231
    %v1401 = vpop.f32.mrb[0].mxu0
    %v1402 = vadd.f32 %v1261, %v1401
    %v1403 = vpop.f32.mrb[0].mxu0
    %v1404 = vpop.f32.mrb[0].mxu0
    %v1405 = vadd.f32 %v1261, %v1404
    %v1406 = vpop.f32.mrb[0].mxu0
    %1407 = vmatprep.mubr.bf16.mxu0 0
    %1408 = vmatmul.mubr.bf16.gmra.mrb[0].mxu0 %v1232
    %v1409 = vpop.f32.mrb[0].mxu0
    %v1410 = vadd.f32 %v1261, %v1409
    %v1411 = vpop.f32.mrb[0].mxu0
    %v1412 = vpop.f32.mrb[0].mxu0
    %v1413 = vadd.f32 %v1261, %v1412
    %v1414 = vpop.f32.mrb[0].mxu0
    %1415 = vmatprep.mubr.bf16.mxu0 0
    %1416 = vmatmul.mubr.bf16.gmra.mrb[0].mxu0 %v1233
    %v1417 = vpop.f32.mrb[0].mxu0
    %v1418 = vadd.f32 %v1261, %v1417
    %v1419 = vpop.f32.mrb[0].mxu0
    %v1420 = vpop.f32.mrb[0].mxu0
    %v1421 = vadd.f32 %v1261, %v1420
    %v1422 = vpop.f32.mrb[0].mxu0
    %1423 = vmatprep.mubr.bf16.mxu0 0
    %1424 = vmatmul.mubr.bf16.gmra.mrb[0].mxu0 %v1234
    %v1425 = vpop.f32.mrb[0].mxu0
    %v1426 = vadd.f32 %v1261, %v1425
    %v1427 = vpop.f32.mrb[0].mxu0
    %v1428 = vpop.f32.mrb[0].mxu0
    %v1429 = vadd.f32 %v1261, %v1428
    %v1430 = vpop.f32.mrb[0].mxu0
    %1431 = vmatprep.mubr.bf16.mxu0 0
    %1432 = vmatmul.mubr.bf16.gmra.mrb[0].mxu0 %v1235
    %v1433 = vpop.f32.mrb[0].mxu0
    %v1434 = vadd.f32 %v1261, %v1433
    %v1435 = vpop.f32.mrb[0].mxu0
    %v1436 = vpop.f32.mrb[0].mxu0
    %v1437 = vadd.f32 %v1261, %v1436
    %v1438 = vpop.f32.mrb[0].mxu0
    %1439 = vmatprep.mubr.bf16.mxu0 0
    %1440 = vmatmul.mubr.bf16.gmra.mrb[0].mxu0 %v1236
    %v1441 = vpop.f32.mrb[0].mxu0
    %v1442 = vadd.f32 %v1261, %v1441
    %v1443 = vpop.f32.mrb[0].mxu0
    %v1444 = vpop.f32.mrb[0].mxu0
    %v1445 = vadd.f32 %v1261, %v1444
    %v1446 = vpop.f32.mrb[0].mxu0
    %1447 = vmatprep.mubr.bf16.mxu0 0
    %1448 = vmatmul.mubr.bf16.gmra.mrb[0].mxu0 %v1237
    %v1449 = vpop.f32.mrb[0].mxu0
    %v1450 = vadd.f32 %v1261, %v1449
    %v1451 = vpop.f32.mrb[0].mxu0
    %v1452 = vpop.f32.mrb[0].mxu0
    %v1453 = vadd.f32 %v1261, %v1452
    %v1454 = vpop.f32.mrb[0].mxu0
    %1455 = vmatprep.mubr.bf16.mxu0 0
    %1456 = vmatmul.mubr.bf16.gmra.mrb[0].mxu0 %v1238
    %v1457 = vpop.f32.mrb[0].mxu0
    %v1458 = vadd.f32 %v1261, %v1457
    %v1459 = vpop.f32.mrb[0].mxu0
    %v1460 = vpop.f32.mrb[0].mxu0
    %v1461 = vadd.f32 %v1261, %v1460
    %v1462 = vpop.f32.mrb[0].mxu0
    %1463 = vmatprep.mubr.bf16.mxu0 0
    %1464 = vmatmul.mubr.bf16.gmra.mrb[0].mxu0 %v1239
    %v1465 = vpop.f32.mrb[0].mxu0
    %v1466 = vadd.f32 %v1261, %v1465
    %v1467 = vpop.f32.mrb[0].mxu0
    %v1468 = vpop.f32.mrb[0].mxu0
    %v1469 = vadd.f32 %v1261, %v1468
    %v1470 = vpop.f32.mrb[0].mxu0
    %1471 = vdwg.mxu0
    %1472 = vst [vmem:[#allocation5] sm:$0xff] %v1346
    %1473 = vst [vmem:[#allocation5 + $0x8] sm:$0xff] %v1349
    %1474 = vst [vmem:[#allocation5 + $0x10] sm:$0xff] %v1354
    %1475 = vst [vmem:[#allocation5 + $0x18] sm:$0xff] %v1357
    %1476 = vst [vmem:[#allocation5 + $0x20] sm:$0xff] %v1362
    %1477 = vst [vmem:[#allocation5 + $0x28] sm:$0xff] %v1365
    %1478 = vst [vmem:[#allocation5 + $0x30] sm:$0xff] %v1370
    %1479 = vst [vmem:[#allocation5 + $0x38] sm:$0xff] %v1373
    %1480 = vst [vmem:[#allocation5 + $0x40] sm:$0xff] %v1378
    %1481 = vst [vmem:[#allocation5 + $0x48] sm:$0xff] %v1381
    %1482 = vst [vmem:[#allocation5 + $0x50] sm:$0xff] %v1386
    %1483 = vst [vmem:[#allocation5 + $0x58] sm:$0xff] %v1389
    %1484 = vst [vmem:[#allocation5 + $0x60] sm:$0xff] %v1394
    %1485 = vst [vmem:[#allocation5 + $0x68] sm:$0xff] %v1397
    %1486 = vst [vmem:[#allocation5 + $0x70] sm:$0xff] %v1402
    %1487 = vst [vmem:[#allocation5 + $0x78] sm:$0xff] %v1405
    %1488 = vst [vmem:[#allocation5 + $0x80] sm:$0xff] %v1410
    %1489 = vst [vmem:[#allocation5 + $0x88] sm:$0xff] %v1413
    %1490 = vst [vmem:[#allocation5 + $0x90] sm:$0xff] %v1418
    %1491 = vst [vmem:[#allocation5 + $0x98] sm:$0xff] %v1421
    %1492 = vst [vmem:[#allocation5 + $0xa0] sm:$0xff] %v1426
    %1493 = vst [vmem:[#allocation5 + $0xa8] sm:$0xff] %v1429
    %1494 = vst [vmem:[#allocation5 + $0xb0] sm:$0xff] %v1434
    %1495 = vst [vmem:[#allocation5 + $0xb8] sm:$0xff] %v1437
    %1496 = vst [vmem:[#allocation5 + $0xc0] sm:$0xff] %v1442
    %1497 = vst [vmem:[#allocation5 + $0xc8] sm:$0xff] %v1445
    %1498 = vst [vmem:[#allocation5 + $0xd0] sm:$0xff] %v1450
    %1499 = vst [vmem:[#allocation5 + $0xd8] sm:$0xff] %v1453
    %1500 = vst [vmem:[#allocation5 + $0xe0] sm:$0xff] %v1458
    %1501 = vst [vmem:[#allocation5 + $0xe8] sm:$0xff] %v1461
    %1502 = vst [vmem:[#allocation5 + $0xf0] sm:$0xff] %v1466
    %1503 = vst [vmem:[#allocation5 + $0xf8] sm:$0xff] %v1469
    // Predicated region
    $region38: #{tpu_custom_call.1} parent=1 // pred_check
      _
    $region39: #{tpu_custom_call.1} parent=1 // pred_check_branch
      %1505 = sbr.rel (0) target = $region41
    $region40: #{tpu_custom_call.1} parent=1 // pred_region
      %s1507 = ssub.s32 4096, 4096
      %1508 = vsyncadd [#allocation4], %s1507
      %s1509 = sshll.u32 [#allocation5], 4
      %s1510 = int_to_ptr.vmem [resolvable:$true] %s1509
      %1515 = dma.vmem_to_hbm [thread:$0]  %s1510, 4096, %s8, [#allocation4], 128, 128, 8
    $region41: #{tpu_custom_call.1} parent=1 // pred_fallthru
      _
    // Predicated region
    $region42: #{tpu_custom_call.1} parent=1 // pred_check
      _
    $region43: #{tpu_custom_call.1} parent=1 // pred_check_branch
      %1517 = sbr.rel (0) target = $region45
    $region44: #{tpu_custom_call.1} parent=1 // pred_region
      %1518 = dma.done [#allocation4], 4096
    $region45: #{tpu_custom_call.1} parent=1 // pred_fallthru
      _
    %1519 = vsyncpa [#allocation3], 1
    %1520 = vsyncpa [#allocation4], 1

</llo_original>
